<compile_context>
chip_gen: v6e
topology: v6e:2x2x1
jax: 0.10.0
libtpu: 0.0.40
codegen_flags: <defaults>
</compile_context>

<pallas_src>
import jax
import jax.numpy as jnp
from jax.experimental import pallas as pl
from jax.experimental.pallas import tpu as pltpu  # noqa: F401

# ----- model hyper-params (Block(dim, heads, mlp_dim, dropout, drop_path)) -----
BATCH = 2
N_TOK = 16
DIM = 32
HEADS = 4
MLP_DIM = 64
HEAD_DIM = DIM // HEADS
SCALE = HEAD_DIM ** -0.5
EPS = 1e-5                     # nn.LayerNorm default
BN = BATCH * N_TOK

assert N_TOK & (N_TOK - 1) == 0, "block-diag mask uses a shift; N_TOK must be 2^k"
_NT_SHIFT = N_TOK.bit_length() - 1


def _normalize(x):
    """LayerNorm without affine (gamma/beta folded into downstream weights).
    var = E[x^2] - E[x]^2 so the two cross-lane reductions are independent."""
    mu = jnp.mean(x, axis=-1, keepdims=True)
    ms = jnp.mean(x * x, axis=-1, keepdims=True)
    var = ms - mu * mu
    return (x - mu) * jax.lax.rsqrt(var + EPS)


def block_kernel(x_ref, wqkv_ref, bqkv_ref, wproj_ref, vecs_ref,
                 w1_ref, b1_ref, w2_ref, o_ref):
    """Whole transformer block in one step.

    x_ref    : (B*N, DIM)                f32   flattened tokens
    wqkv_ref : (3, HEADS, DIM, HEAD_DIM) bf16  per-head q/k/v weights (LN1 + SCALE folded)
    bqkv_ref : (3, HEADS, 1, HEAD_DIM)   f32   per-head q/k/v biases  (LN1 + SCALE folded)
    wproj_ref: (HEADS, HEAD_DIM, DIM)    bf16  per-head output-projection weights
    vecs_ref : (2, DIM)                  f32   rows = [bproj, b2]
    w1_ref   : (DIM, MLP_DIM)            bf16  fc1 weights (LN2 affine folded)
    b1_ref   : (1, MLP_DIM)              f32   fc1 bias    (LN2 affine folded)
    w2_ref   : (MLP_DIM, DIM)            bf16  fc2 weights
    """
    x = x_ref[...]                                            # (BN, DIM) f32

    # Block-diagonal additive mask: 0 inside a batch's N_TOK x N_TOK block,
    # -1e9 across batches. Built from 2-D iotas (a few VPU ops), no extra DMA.
    row_i = jax.lax.broadcasted_iota(jnp.int32, (BN, BN), 0)
    col_i = jax.lax.broadcasted_iota(jnp.int32, (BN, BN), 1)
    mask = jnp.where((row_i >> _NT_SHIFT) == (col_i >> _NT_SHIFT),
                     0.0, -1e9).astype(jnp.float32)

    # ---------------- x + Attn(LN1(x)) ----------------
    xn = _normalize(x)                                        # LN1 affine pre-folded
    xn_b = xn.astype(jnp.bfloat16)                            # bf16 MXU operand

    acc = jnp.zeros((BN, DIM), jnp.float32)                   # projected attn out
    for h in range(HEADS):                                    # static unroll
        # Per-head q/k/v straight from their own GEMMs (no lane slicing).
        qh = jnp.dot(xn_b, wqkv_ref[0, h],
                     preferred_element_type=jnp.float32) + bqkv_ref[0, h]
        kh = jnp.dot(xn_b, wqkv_ref[1, h],
                     preferred_element_type=jnp.float32) + bqkv_ref[1, h]
        vh = jnp.dot(xn_b, wqkv_ref[2, h],
                     preferred_element_type=jnp.float32) + bqkv_ref[2, h]
        # Scores over all B*N rows at once; SCALE is pre-folded into q.
        s = jax.lax.dot_general(
            qh.astype(jnp.bfloat16), kh.astype(jnp.bfloat16),
            (((1,), (1,)), ((), ())),
            preferred_element_type=jnp.float32)               # (BN, BN)
        s = s + mask
        s = s - jnp.max(s, axis=-1, keepdims=True)            # kept for safety
        p = jnp.exp(s)
        denom = jnp.sum(p, axis=-1, keepdims=True)
        p = p * pl.reciprocal(denom, approx=True)             # EUP slot
        oh = jnp.dot(p.astype(jnp.bfloat16), vh.astype(jnp.bfloat16),
                     preferred_element_type=jnp.float32)      # (BN, hd)
        # Fold the head output straight into the output projection
        # (leading-axis weight index -> no weight slicing, no concat).
        acc = acc + jnp.dot(oh.astype(jnp.bfloat16), wproj_ref[h],
                            preferred_element_type=jnp.float32)

    x = x + acc + vecs_ref[0:1, :]                            # + bproj

    # ---------------- x + MLP(LN2(x)) ----------------
    x2 = _normalize(x)                                        # LN2 affine pre-folded
    h1 = jnp.dot(x2.astype(jnp.bfloat16), w1_ref[...],
                 preferred_element_type=jnp.float32) + b1_ref[...]
    # exact (erf-based) GELU in f32, matching nn.GELU() default
    h1 = 0.5 * h1 * (1.0 + jax.lax.erf(h1 * 0.7071067811865476))
    h2 = jnp.dot(h1.astype(jnp.bfloat16), w2_ref[...],
                 preferred_element_type=jnp.float32) + vecs_ref[1:2, :]

    o_ref[...] = x + h2


def transformer_block(x, params):
    """x: (B, N, C) f32. params: kernel-form weights (see make_params)."""
    B, N, C = x.shape
    x_flat = x.reshape(B * N, C)
    # Single invocation, no grid: every array is a full-extent VMEM block
    # (total resident footprint « 1 MiB on all TPU generations).
    out = pl.pallas_call(
        block_kernel,
        out_shape=jax.ShapeDtypeStruct((B * N, C), jnp.float32),
    )(x_flat, *params)
    return out.reshape(B, N, C)


# ------------- pure-JAX reference (mirrors the PyTorch forward, all f32) -------------
def _layernorm_ref(x, gamma, beta):
    mu = jnp.mean(x, axis=-1, keepdims=True)
    var = jnp.mean((x - mu) ** 2, axis=-1, keepdims=True)
    return (x - mu) * jax.lax.rsqrt(var + EPS) * gamma + beta


def block_reference(x, raw):
    (g1, bt1, Wqkv, bqkv, Wproj, bproj, g2, bt2, W1, b1, W2, b2) = raw
    B, N, C = x.shape

    xn = _layernorm_ref(x, g1, bt1)
    qkv = xn @ Wqkv.T + bqkv                                   # (B, N, 3C)
    qkv = qkv.reshape(B, N, 3, HEADS, HEAD_DIM).transpose(2, 0, 3, 1, 4)
    q, k, v = qkv[0], qkv[1], qkv[2]                           # (B, H, N, hd)
    attn = jnp.einsum("bhnd,bhmd->bhnm", q, k) * SCALE
    attn = jax.nn.softmax(attn, axis=-1)
    o = jnp.einsum("bhnm,bhmd->bhnd", attn, v)
    o = o.transpose(0, 2, 1, 3).reshape(B, N, C)
    x = x + (o @ Wproj.T + bproj)

    x2 = _layernorm_ref(x, g2, bt2)
    h1 = x2 @ W1.T + b1
    h1 = 0.5 * h1 * (1.0 + jax.lax.erf(h1 * 0.7071067811865476))
    h2 = h1 @ W2.T + b2
    return x + h2


def make_params(key):
    ks = jax.random.split(key, 8)
    g1 = jnp.ones((DIM,), jnp.float32)
    bt1 = jnp.zeros((DIM,), jnp.float32)
    g2 = jnp.ones((DIM,), jnp.float32)
    bt2 = jnp.zeros((DIM,), jnp.float32)
    Wqkv = 0.02 * jax.random.normal(ks[0], (3 * DIM, DIM), jnp.float32)
    bqkv = 0.01 * jax.random.normal(ks[1], (3 * DIM,), jnp.float32)
    Wproj = 0.02 * jax.random.normal(ks[2], (DIM, DIM), jnp.float32)
    bproj = 0.01 * jax.random.normal(ks[3], (DIM,), jnp.float32)
    W1 = 0.02 * jax.random.normal(ks[4], (MLP_DIM, DIM), jnp.float32)
    b1 = 0.01 * jax.random.normal(ks[5], (MLP_DIM,), jnp.float32)
    W2 = 0.02 * jax.random.normal(ks[6], (DIM, MLP_DIM), jnp.float32)
    b2 = 0.01 * jax.random.normal(ks[7], (DIM,), jnp.float32)
    raw = (g1, bt1, Wqkv, bqkv, Wproj, bproj, g2, bt2, W1, b1, W2, b2)

    # ---- kernel-form params: exact trace-time folds, bf16 MXU weights ----
    # QKV weight in (in, out) orientation; output cols ordered [qkv, head, hd].
    WqkvT = Wqkv.T                                             # (DIM, 3*DIM)
    Wst = WqkvT.reshape(DIM, 3, HEADS, HEAD_DIM)               # (DIM, 3, H, hd)
    bst = bqkv.reshape(3, HEADS, HEAD_DIM)
    # Fold LN1 affine: W' = diag(g1) @ W ; b' = bt1 @ W + b
    Wf = Wst * g1[:, None, None, None]
    bf = jnp.einsum("d,dihk->ihk", bt1, Wst) + bst
    Wf = Wf.transpose(1, 2, 0, 3)                              # (3, H, DIM, hd)
    # Fold attention SCALE into the Q weights / bias.
    Wf = Wf.at[0].multiply(SCALE)
    bf = bf.at[0].multiply(SCALE)
    wqkv_k = Wf.astype(jnp.bfloat16)                           # (3, H, DIM, hd)
    bqkv_k = bf.reshape(3, HEADS, 1, HEAD_DIM)                 # f32

    # Per-head output-projection weights: (H, hd, DIM)
    wproj_k = Wproj.T.reshape(HEADS, HEAD_DIM, DIM).astype(jnp.bfloat16)

    # MLP with LN2 affine folded into fc1.
    W1k = W1.T * g2[:, None]                                   # (DIM, MLP_DIM)
    b1k = bt2 @ W1.T + b1                                      # (MLP_DIM,)
    w1_k = W1k.astype(jnp.bfloat16)
    b1_k = b1k.reshape(1, MLP_DIM)                             # f32
    w2_k = W2.T.astype(jnp.bfloat16)                           # (MLP_DIM, DIM)

    vecs_k = jnp.stack([bproj, b2], axis=0)                    # (2, DIM) f32

    kern = [wqkv_k, bqkv_k, wproj_k, vecs_k, w1_k, b1_k, w2_k]
    return raw, kern


if __name__ == "__main__":
    key = jax.random.PRNGKey(0)
    kx, kp = jax.random.split(key)
    x = jax.random.normal(kx, (BATCH, N_TOK, DIM), jnp.float32)
    raw_params, kern_params = make_params(kp)

    out = transformer_block(x, kern_params)
    out = jax.block_until_ready(out)

    ref = block_reference(x, raw_params)
    assert out.shape == (BATCH, N_TOK, DIM)
    max_err = float(jnp.max(jnp.abs(out - ref)))
    # tolerance loosened for bf16 MXU operands + approx (EUP) softmax reciprocal
    assert max_err < 5e-3, max_err
    print("KERNEL_OK")
</pallas_src>

<mosaic_0001>
module attributes {stable_mosaic.version = 11 : i64} {
  func.func @block_kernel(%arg0: memref<32x32xf32, #tpu.memory_space<vmem>>, %arg1: memref<3x4x32x8xbf16, #tpu.memory_space<vmem>>, %arg2: memref<3x4x1x8xf32, #tpu.memory_space<vmem>>, %arg3: memref<4x8x32xbf16, #tpu.memory_space<vmem>>, %arg4: memref<2x32xf32, #tpu.memory_space<vmem>>, %arg5: memref<32x64xbf16, #tpu.memory_space<vmem>>, %arg6: memref<1x64xf32, #tpu.memory_space<vmem>>, %arg7: memref<64x32xbf16, #tpu.memory_space<vmem>>, %arg8: memref<32x32xf32, #tpu.memory_space<vmem>>) attributes {dimension_semantics = [], scalar_prefetch = 0 : i64, scratch_operands = 0 : i64, tpu.core_type = #tpu.core_type<tc>} {
    %c0 = arith.constant 0 : index
    %c0_0 = arith.constant 0 : index
    %0 = vector.load %arg0[%c0, %c0_0] : memref<32x32xf32, #tpu.memory_space<vmem>>, vector<32x32xf32>
    %1 = tpu.iota {dimensions = array<i32: 0>} : vector<32x32xi32>
    %2 = tpu.iota {dimensions = array<i32: 1>} : vector<32x32xi32>
    %c4_i32 = arith.constant 4 : i32
    %3 = vector.broadcast %c4_i32 : i32 to vector<32x32xi32>
    %4 = arith.shrsi %1, %3 : vector<32x32xi32>
    %c4_i32_1 = arith.constant 4 : i32
    %5 = vector.broadcast %c4_i32_1 : i32 to vector<32x32xi32>
    %6 = arith.shrsi %2, %5 : vector<32x32xi32>
    %7 = arith.cmpi eq, %4, %6 : vector<32x32xi32>
    %cst = arith.constant 0.000000e+00 : f32
    %cst_2 = arith.constant -1.000000e+09 : f32
    %8 = vector.broadcast %cst : f32 to vector<32x32xf32>
    %9 = vector.broadcast %cst_2 : f32 to vector<32x32xf32>
    %10 = arith.select %7, %8, %9 : vector<32x32xi1>, vector<32x32xf32>
    %cst_3 = arith.constant dense<0.000000e+00> : vector<32xf32>
    %11 = vector.multi_reduction <add>, %0, %cst_3 [1] : vector<32x32xf32> to vector<32xf32>
    %12 = vector.shape_cast %11 : vector<32xf32> to vector<32x1xf32>
    %cst_4 = arith.constant 3.200000e+01 : f32
    %13 = vector.broadcast %cst_4 : f32 to vector<32x1xf32>
    %14 = arith.divf %12, %13 : vector<32x1xf32>
    %15 = arith.mulf %0, %0 : vector<32x32xf32>
    %cst_5 = arith.constant dense<0.000000e+00> : vector<32xf32>
    %16 = vector.multi_reduction <add>, %15, %cst_5 [1] : vector<32x32xf32> to vector<32xf32>
    %17 = vector.shape_cast %16 : vector<32xf32> to vector<32x1xf32>
    %cst_6 = arith.constant 3.200000e+01 : f32
    %18 = vector.broadcast %cst_6 : f32 to vector<32x1xf32>
    %19 = arith.divf %17, %18 : vector<32x1xf32>
    %20 = arith.mulf %14, %14 : vector<32x1xf32>
    %21 = arith.subf %19, %20 : vector<32x1xf32>
    %22 = vector.broadcast %14 : vector<32x1xf32> to vector<32x32xf32>
    %23 = arith.subf %0, %22 : vector<32x32xf32>
    %cst_7 = arith.constant 9.99999974E-6 : f32
    %24 = vector.broadcast %cst_7 : f32 to vector<32x1xf32>
    %25 = arith.addf %21, %24 : vector<32x1xf32>
    %26 = math.rsqrt %25 : vector<32x1xf32>
    %27 = vector.broadcast %26 : vector<32x1xf32> to vector<32x32xf32>
    %28 = arith.mulf %23, %27 : vector<32x32xf32>
    %29 = arith.truncf %28 : vector<32x32xf32> to vector<32x32xbf16>
    %cst_8 = arith.constant 0.000000e+00 : f32
    %30 = vector.broadcast %cst_8 : f32 to vector<32x32xf32>
    %c0_9 = arith.constant 0 : index
    %c0_10 = arith.constant 0 : index
    %c0_11 = arith.constant 0 : index
    %c0_12 = arith.constant 0 : index
    %31 = vector.load %arg1[%c0_9, %c0_10, %c0_11, %c0_12] : memref<3x4x32x8xbf16, #tpu.memory_space<vmem>>, vector<1x1x32x8xbf16>
    %32 = vector.shape_cast %31 : vector<1x1x32x8xbf16> to vector<32x8xbf16>
    %cst_13 = arith.constant dense<0.000000e+00> : vector<32x8xf32>
    %33 = tpu.matmul %29, %32, %cst_13 {dimension_numbers = #tpu.dot_dimension_numbers<[1], [0], [0], [1], [0, 0, 1, 1], [], []>} : vector<32x32xbf16>, vector<32x8xbf16>, vector<32x8xf32> -> vector<32x8xf32>
    %c0_14 = arith.constant 0 : index
    %c0_15 = arith.constant 0 : index
    %c0_16 = arith.constant 0 : index
    %c0_17 = arith.constant 0 : index
    %34 = vector.load %arg2[%c0_14, %c0_15, %c0_16, %c0_17] : memref<3x4x1x8xf32, #tpu.memory_space<vmem>>, vector<1x1x1x8xf32>
    %35 = vector.shape_cast %34 : vector<1x1x1x8xf32> to vector<1x8xf32>
    %36 = vector.broadcast %35 : vector<1x8xf32> to vector<32x8xf32>
    %37 = arith.addf %33, %36 : vector<32x8xf32>
    %c1 = arith.constant 1 : index
    %c0_18 = arith.constant 0 : index
    %c0_19 = arith.constant 0 : index
    %c0_20 = arith.constant 0 : index
    %38 = vector.load %arg1[%c1, %c0_18, %c0_19, %c0_20] : memref<3x4x32x8xbf16, #tpu.memory_space<vmem>>, vector<1x1x32x8xbf16>
    %39 = vector.shape_cast %38 : vector<1x1x32x8xbf16> to vector<32x8xbf16>
    %cst_21 = arith.constant dense<0.000000e+00> : vector<32x8xf32>
    %40 = tpu.matmul %29, %39, %cst_21 {dimension_numbers = #tpu.dot_dimension_numbers<[1], [0], [0], [1], [0, 0, 1, 1], [], []>} : vector<32x32xbf16>, vector<32x8xbf16>, vector<32x8xf32> -> vector<32x8xf32>
    %c1_22 = arith.constant 1 : index
    %c0_23 = arith.constant 0 : index
    %c0_24 = arith.constant 0 : index
    %c0_25 = arith.constant 0 : index
    %41 = vector.load %arg2[%c1_22, %c0_23, %c0_24, %c0_25] : memref<3x4x1x8xf32, #tpu.memory_space<vmem>>, vector<1x1x1x8xf32>
    %42 = vector.shape_cast %41 : vector<1x1x1x8xf32> to vector<1x8xf32>
    %43 = vector.broadcast %42 : vector<1x8xf32> to vector<32x8xf32>
    %44 = arith.addf %40, %43 : vector<32x8xf32>
    %c2 = arith.constant 2 : index
    %c0_26 = arith.constant 0 : index
    %c0_27 = arith.constant 0 : index
    %c0_28 = arith.constant 0 : index
    %45 = vector.load %arg1[%c2, %c0_26, %c0_27, %c0_28] : memref<3x4x32x8xbf16, #tpu.memory_space<vmem>>, vector<1x1x32x8xbf16>
    %46 = vector.shape_cast %45 : vector<1x1x32x8xbf16> to vector<32x8xbf16>
    %cst_29 = arith.constant dense<0.000000e+00> : vector<32x8xf32>
    %47 = tpu.matmul %29, %46, %cst_29 {dimension_numbers = #tpu.dot_dimension_numbers<[1], [0], [0], [1], [0, 0, 1, 1], [], []>} : vector<32x32xbf16>, vector<32x8xbf16>, vector<32x8xf32> -> vector<32x8xf32>
    %c2_30 = arith.constant 2 : index
    %c0_31 = arith.constant 0 : index
    %c0_32 = arith.constant 0 : index
    %c0_33 = arith.constant 0 : index
    %48 = vector.load %arg2[%c2_30, %c0_31, %c0_32, %c0_33] : memref<3x4x1x8xf32, #tpu.memory_space<vmem>>, vector<1x1x1x8xf32>
    %49 = vector.shape_cast %48 : vector<1x1x1x8xf32> to vector<1x8xf32>
    %50 = vector.broadcast %49 : vector<1x8xf32> to vector<32x8xf32>
    %51 = arith.addf %47, %50 : vector<32x8xf32>
    %52 = arith.truncf %37 : vector<32x8xf32> to vector<32x8xbf16>
    %53 = arith.truncf %44 : vector<32x8xf32> to vector<32x8xbf16>
    %cst_34 = arith.constant dense<0.000000e+00> : vector<32x32xf32>
    %54 = tpu.matmul %52, %53, %cst_34 {dimension_numbers = #tpu.dot_dimension_numbers<[1], [1], [0], [0], [0, 0, 1, 0], [], []>} : vector<32x8xbf16>, vector<32x8xbf16>, vector<32x32xf32> -> vector<32x32xf32>
    %55 = arith.addf %54, %10 : vector<32x32xf32>
    %cst_35 = arith.constant dense<0xFF800000> : vector<32xf32>
    %56 = vector.multi_reduction <maximumf>, %55, %cst_35 [1] : vector<32x32xf32> to vector<32xf32>
    %57 = vector.shape_cast %56 : vector<32xf32> to vector<32x1xf32>
    %58 = vector.broadcast %57 : vector<32x1xf32> to vector<32x32xf32>
    %59 = arith.subf %55, %58 : vector<32x32xf32>
    %60 = math.exp %59 : vector<32x32xf32>
    %cst_36 = arith.constant dense<0.000000e+00> : vector<32xf32>
    %61 = vector.multi_reduction <add>, %60, %cst_36 [1] : vector<32x32xf32> to vector<32xf32>
    %62 = vector.shape_cast %61 : vector<32xf32> to vector<32x1xf32>
    %63 = tpu.reciprocal %62 {approx = true} : vector<32x1xf32> -> vector<32x1xf32>
    %64 = vector.broadcast %63 : vector<32x1xf32> to vector<32x32xf32>
    %65 = arith.mulf %60, %64 : vector<32x32xf32>
    %66 = arith.truncf %65 : vector<32x32xf32> to vector<32x32xbf16>
    %67 = arith.truncf %51 : vector<32x8xf32> to vector<32x8xbf16>
    %cst_37 = arith.constant dense<0.000000e+00> : vector<32x8xf32>
    %68 = tpu.matmul %66, %67, %cst_37 {dimension_numbers = #tpu.dot_dimension_numbers<[1], [0], [0], [1], [0, 0, 1, 1], [], []>} : vector<32x32xbf16>, vector<32x8xbf16>, vector<32x8xf32> -> vector<32x8xf32>
    %69 = arith.truncf %68 : vector<32x8xf32> to vector<32x8xbf16>
    %c0_38 = arith.constant 0 : index
    %c0_39 = arith.constant 0 : index
    %c0_40 = arith.constant 0 : index
    %70 = vector.load %arg3[%c0_38, %c0_39, %c0_40] : memref<4x8x32xbf16, #tpu.memory_space<vmem>>, vector<1x8x32xbf16>
    %71 = vector.shape_cast %70 : vector<1x8x32xbf16> to vector<8x32xbf16>
    %cst_41 = arith.constant dense<0.000000e+00> : vector<32x32xf32>
    %72 = tpu.matmul %69, %71, %cst_41 {dimension_numbers = #tpu.dot_dimension_numbers<[1], [0], [0], [1], [0, 0, 1, 1], [], []>} : vector<32x8xbf16>, vector<8x32xbf16>, vector<32x32xf32> -> vector<32x32xf32>
    %73 = arith.addf %30, %72 : vector<32x32xf32>
    %c0_42 = arith.constant 0 : index
    %c1_43 = arith.constant 1 : index
    %c0_44 = arith.constant 0 : index
    %c0_45 = arith.constant 0 : index
    %74 = vector.load %arg1[%c0_42, %c1_43, %c0_44, %c0_45] : memref<3x4x32x8xbf16, #tpu.memory_space<vmem>>, vector<1x1x32x8xbf16>
    %75 = vector.shape_cast %74 : vector<1x1x32x8xbf16> to vector<32x8xbf16>
    %cst_46 = arith.constant dense<0.000000e+00> : vector<32x8xf32>
    %76 = tpu.matmul %29, %75, %cst_46 {dimension_numbers = #tpu.dot_dimension_numbers<[1], [0], [0], [1], [0, 0, 1, 1], [], []>} : vector<32x32xbf16>, vector<32x8xbf16>, vector<32x8xf32> -> vector<32x8xf32>
    %c0_47 = arith.constant 0 : index
    %c1_48 = arith.constant 1 : index
    %c0_49 = arith.constant 0 : index
    %c0_50 = arith.constant 0 : index
    %77 = vector.load %arg2[%c0_47, %c1_48, %c0_49, %c0_50] : memref<3x4x1x8xf32, #tpu.memory_space<vmem>>, vector<1x1x1x8xf32>
    %78 = vector.shape_cast %77 : vector<1x1x1x8xf32> to vector<1x8xf32>
    %79 = vector.broadcast %78 : vector<1x8xf32> to vector<32x8xf32>
    %80 = arith.addf %76, %79 : vector<32x8xf32>
    %c1_51 = arith.constant 1 : index
    %c1_52 = arith.constant 1 : index
    %c0_53 = arith.constant 0 : index
    %c0_54 = arith.constant 0 : index
    %81 = vector.load %arg1[%c1_51, %c1_52, %c0_53, %c0_54] : memref<3x4x32x8xbf16, #tpu.memory_space<vmem>>, vector<1x1x32x8xbf16>
    %82 = vector.shape_cast %81 : vector<1x1x32x8xbf16> to vector<32x8xbf16>
    %cst_55 = arith.constant dense<0.000000e+00> : vector<32x8xf32>
    %83 = tpu.matmul %29, %82, %cst_55 {dimension_numbers = #tpu.dot_dimension_numbers<[1], [0], [0], [1], [0, 0, 1, 1], [], []>} : vector<32x32xbf16>, vector<32x8xbf16>, vector<32x8xf32> -> vector<32x8xf32>
    %c1_56 = arith.constant 1 : index
    %c1_57 = arith.constant 1 : index
    %c0_58 = arith.constant 0 : index
    %c0_59 = arith.constant 0 : index
    %84 = vector.load %arg2[%c1_56, %c1_57, %c0_58, %c0_59] : memref<3x4x1x8xf32, #tpu.memory_space<vmem>>, vector<1x1x1x8xf32>
    %85 = vector.shape_cast %84 : vector<1x1x1x8xf32> to vector<1x8xf32>
    %86 = vector.broadcast %85 : vector<1x8xf32> to vector<32x8xf32>
    %87 = arith.addf %83, %86 : vector<32x8xf32>
    %c2_60 = arith.constant 2 : index
    %c1_61 = arith.constant 1 : index
    %c0_62 = arith.constant 0 : index
    %c0_63 = arith.constant 0 : index
    %88 = vector.load %arg1[%c2_60, %c1_61, %c0_62, %c0_63] : memref<3x4x32x8xbf16, #tpu.memory_space<vmem>>, vector<1x1x32x8xbf16>
    %89 = vector.shape_cast %88 : vector<1x1x32x8xbf16> to vector<32x8xbf16>
    %cst_64 = arith.constant dense<0.000000e+00> : vector<32x8xf32>
    %90 = tpu.matmul %29, %89, %cst_64 {dimension_numbers = #tpu.dot_dimension_numbers<[1], [0], [0], [1], [0, 0, 1, 1], [], []>} : vector<32x32xbf16>, vector<32x8xbf16>, vector<32x8xf32> -> vector<32x8xf32>
    %c2_65 = arith.constant 2 : index
    %c1_66 = arith.constant 1 : index
    %c0_67 = arith.constant 0 : index
    %c0_68 = arith.constant 0 : index
    %91 = vector.load %arg2[%c2_65, %c1_66, %c0_67, %c0_68] : memref<3x4x1x8xf32, #tpu.memory_space<vmem>>, vector<1x1x1x8xf32>
    %92 = vector.shape_cast %91 : vector<1x1x1x8xf32> to vector<1x8xf32>
    %93 = vector.broadcast %92 : vector<1x8xf32> to vector<32x8xf32>
    %94 = arith.addf %90, %93 : vector<32x8xf32>
    %95 = arith.truncf %80 : vector<32x8xf32> to vector<32x8xbf16>
    %96 = arith.truncf %87 : vector<32x8xf32> to vector<32x8xbf16>
    %cst_69 = arith.constant dense<0.000000e+00> : vector<32x32xf32>
    %97 = tpu.matmul %95, %96, %cst_69 {dimension_numbers = #tpu.dot_dimension_numbers<[1], [1], [0], [0], [0, 0, 1, 0], [], []>} : vector<32x8xbf16>, vector<32x8xbf16>, vector<32x32xf32> -> vector<32x32xf32>
    %98 = arith.addf %97, %10 : vector<32x32xf32>
    %cst_70 = arith.constant dense<0xFF800000> : vector<32xf32>
    %99 = vector.multi_reduction <maximumf>, %98, %cst_70 [1] : vector<32x32xf32> to vector<32xf32>
    %100 = vector.shape_cast %99 : vector<32xf32> to vector<32x1xf32>
    %101 = vector.broadcast %100 : vector<32x1xf32> to vector<32x32xf32>
    %102 = arith.subf %98, %101 : vector<32x32xf32>
    %103 = math.exp %102 : vector<32x32xf32>
    %cst_71 = arith.constant dense<0.000000e+00> : vector<32xf32>
    %104 = vector.multi_reduction <add>, %103, %cst_71 [1] : vector<32x32xf32> to vector<32xf32>
    %105 = vector.shape_cast %104 : vector<32xf32> to vector<32x1xf32>
    %106 = tpu.reciprocal %105 {approx = true} : vector<32x1xf32> -> vector<32x1xf32>
    %107 = vector.broadcast %106 : vector<32x1xf32> to vector<32x32xf32>
    %108 = arith.mulf %103, %107 : vector<32x32xf32>
    %109 = arith.truncf %108 : vector<32x32xf32> to vector<32x32xbf16>
    %110 = arith.truncf %94 : vector<32x8xf32> to vector<32x8xbf16>
    %cst_72 = arith.constant dense<0.000000e+00> : vector<32x8xf32>
    %111 = tpu.matmul %109, %110, %cst_72 {dimension_numbers = #tpu.dot_dimension_numbers<[1], [0], [0], [1], [0, 0, 1, 1], [], []>} : vector<32x32xbf16>, vector<32x8xbf16>, vector<32x8xf32> -> vector<32x8xf32>
    %112 = arith.truncf %111 : vector<32x8xf32> to vector<32x8xbf16>
    %c1_73 = arith.constant 1 : index
    %c0_74 = arith.constant 0 : index
    %c0_75 = arith.constant 0 : index
    %113 = vector.load %arg3[%c1_73, %c0_74, %c0_75] : memref<4x8x32xbf16, #tpu.memory_space<vmem>>, vector<1x8x32xbf16>
    %114 = vector.shape_cast %113 : vector<1x8x32xbf16> to vector<8x32xbf16>
    %cst_76 = arith.constant dense<0.000000e+00> : vector<32x32xf32>
    %115 = tpu.matmul %112, %114, %cst_76 {dimension_numbers = #tpu.dot_dimension_numbers<[1], [0], [0], [1], [0, 0, 1, 1], [], []>} : vector<32x8xbf16>, vector<8x32xbf16>, vector<32x32xf32> -> vector<32x32xf32>
    %116 = arith.addf %73, %115 : vector<32x32xf32>
    %c0_77 = arith.constant 0 : index
    %c2_78 = arith.constant 2 : index
    %c0_79 = arith.constant 0 : index
    %c0_80 = arith.constant 0 : index
    %117 = vector.load %arg1[%c0_77, %c2_78, %c0_79, %c0_80] : memref<3x4x32x8xbf16, #tpu.memory_space<vmem>>, vector<1x1x32x8xbf16>
    %118 = vector.shape_cast %117 : vector<1x1x32x8xbf16> to vector<32x8xbf16>
    %cst_81 = arith.constant dense<0.000000e+00> : vector<32x8xf32>
    %119 = tpu.matmul %29, %118, %cst_81 {dimension_numbers = #tpu.dot_dimension_numbers<[1], [0], [0], [1], [0, 0, 1, 1], [], []>} : vector<32x32xbf16>, vector<32x8xbf16>, vector<32x8xf32> -> vector<32x8xf32>
    %c0_82 = arith.constant 0 : index
    %c2_83 = arith.constant 2 : index
    %c0_84 = arith.constant 0 : index
    %c0_85 = arith.constant 0 : index
    %120 = vector.load %arg2[%c0_82, %c2_83, %c0_84, %c0_85] : memref<3x4x1x8xf32, #tpu.memory_space<vmem>>, vector<1x1x1x8xf32>
    %121 = vector.shape_cast %120 : vector<1x1x1x8xf32> to vector<1x8xf32>
    %122 = vector.broadcast %121 : vector<1x8xf32> to vector<32x8xf32>
    %123 = arith.addf %119, %122 : vector<32x8xf32>
    %c1_86 = arith.constant 1 : index
    %c2_87 = arith.constant 2 : index
    %c0_88 = arith.constant 0 : index
    %c0_89 = arith.constant 0 : index
    %124 = vector.load %arg1[%c1_86, %c2_87, %c0_88, %c0_89] : memref<3x4x32x8xbf16, #tpu.memory_space<vmem>>, vector<1x1x32x8xbf16>
    %125 = vector.shape_cast %124 : vector<1x1x32x8xbf16> to vector<32x8xbf16>
    %cst_90 = arith.constant dense<0.000000e+00> : vector<32x8xf32>
    %126 = tpu.matmul %29, %125, %cst_90 {dimension_numbers = #tpu.dot_dimension_numbers<[1], [0], [0], [1], [0, 0, 1, 1], [], []>} : vector<32x32xbf16>, vector<32x8xbf16>, vector<32x8xf32> -> vector<32x8xf32>
    %c1_91 = arith.constant 1 : index
    %c2_92 = arith.constant 2 : index
    %c0_93 = arith.constant 0 : index
    %c0_94 = arith.constant 0 : index
    %127 = vector.load %arg2[%c1_91, %c2_92, %c0_93, %c0_94] : memref<3x4x1x8xf32, #tpu.memory_space<vmem>>, vector<1x1x1x8xf32>
    %128 = vector.shape_cast %127 : vector<1x1x1x8xf32> to vector<1x8xf32>
    %129 = vector.broadcast %128 : vector<1x8xf32> to vector<32x8xf32>
    %130 = arith.addf %126, %129 : vector<32x8xf32>
    %c2_95 = arith.constant 2 : index
    %c2_96 = arith.constant 2 : index
    %c0_97 = arith.constant 0 : index
    %c0_98 = arith.constant 0 : index
    %131 = vector.load %arg1[%c2_95, %c2_96, %c0_97, %c0_98] : memref<3x4x32x8xbf16, #tpu.memory_space<vmem>>, vector<1x1x32x8xbf16>
    %132 = vector.shape_cast %131 : vector<1x1x32x8xbf16> to vector<32x8xbf16>
    %cst_99 = arith.constant dense<0.000000e+00> : vector<32x8xf32>
    %133 = tpu.matmul %29, %132, %cst_99 {dimension_numbers = #tpu.dot_dimension_numbers<[1], [0], [0], [1], [0, 0, 1, 1], [], []>} : vector<32x32xbf16>, vector<32x8xbf16>, vector<32x8xf32> -> vector<32x8xf32>
    %c2_100 = arith.constant 2 : index
    %c2_101 = arith.constant 2 : index
    %c0_102 = arith.constant 0 : index
    %c0_103 = arith.constant 0 : index
    %134 = vector.load %arg2[%c2_100, %c2_101, %c0_102, %c0_103] : memref<3x4x1x8xf32, #tpu.memory_space<vmem>>, vector<1x1x1x8xf32>
    %135 = vector.shape_cast %134 : vector<1x1x1x8xf32> to vector<1x8xf32>
    %136 = vector.broadcast %135 : vector<1x8xf32> to vector<32x8xf32>
    %137 = arith.addf %133, %136 : vector<32x8xf32>
    %138 = arith.truncf %123 : vector<32x8xf32> to vector<32x8xbf16>
    %139 = arith.truncf %130 : vector<32x8xf32> to vector<32x8xbf16>
    %cst_104 = arith.constant dense<0.000000e+00> : vector<32x32xf32>
    %140 = tpu.matmul %138, %139, %cst_104 {dimension_numbers = #tpu.dot_dimension_numbers<[1], [1], [0], [0], [0, 0, 1, 0], [], []>} : vector<32x8xbf16>, vector<32x8xbf16>, vector<32x32xf32> -> vector<32x32xf32>
    %141 = arith.addf %140, %10 : vector<32x32xf32>
    %cst_105 = arith.constant dense<0xFF800000> : vector<32xf32>
    %142 = vector.multi_reduction <maximumf>, %141, %cst_105 [1] : vector<32x32xf32> to vector<32xf32>
    %143 = vector.shape_cast %142 : vector<32xf32> to vector<32x1xf32>
    %144 = vector.broadcast %143 : vector<32x1xf32> to vector<32x32xf32>
    %145 = arith.subf %141, %144 : vector<32x32xf32>
    %146 = math.exp %145 : vector<32x32xf32>
    %cst_106 = arith.constant dense<0.000000e+00> : vector<32xf32>
    %147 = vector.multi_reduction <add>, %146, %cst_106 [1] : vector<32x32xf32> to vector<32xf32>
    %148 = vector.shape_cast %147 : vector<32xf32> to vector<32x1xf32>
    %149 = tpu.reciprocal %148 {approx = true} : vector<32x1xf32> -> vector<32x1xf32>
    %150 = vector.broadcast %149 : vector<32x1xf32> to vector<32x32xf32>
    %151 = arith.mulf %146, %150 : vector<32x32xf32>
    %152 = arith.truncf %151 : vector<32x32xf32> to vector<32x32xbf16>
    %153 = arith.truncf %137 : vector<32x8xf32> to vector<32x8xbf16>
    %cst_107 = arith.constant dense<0.000000e+00> : vector<32x8xf32>
    %154 = tpu.matmul %152, %153, %cst_107 {dimension_numbers = #tpu.dot_dimension_numbers<[1], [0], [0], [1], [0, 0, 1, 1], [], []>} : vector<32x32xbf16>, vector<32x8xbf16>, vector<32x8xf32> -> vector<32x8xf32>
    %155 = arith.truncf %154 : vector<32x8xf32> to vector<32x8xbf16>
    %c2_108 = arith.constant 2 : index
    %c0_109 = arith.constant 0 : index
    %c0_110 = arith.constant 0 : index
    %156 = vector.load %arg3[%c2_108, %c0_109, %c0_110] : memref<4x8x32xbf16, #tpu.memory_space<vmem>>, vector<1x8x32xbf16>
    %157 = vector.shape_cast %156 : vector<1x8x32xbf16> to vector<8x32xbf16>
    %cst_111 = arith.constant dense<0.000000e+00> : vector<32x32xf32>
    %158 = tpu.matmul %155, %157, %cst_111 {dimension_numbers = #tpu.dot_dimension_numbers<[1], [0], [0], [1], [0, 0, 1, 1], [], []>} : vector<32x8xbf16>, vector<8x32xbf16>, vector<32x32xf32> -> vector<32x32xf32>
    %159 = arith.addf %116, %158 : vector<32x32xf32>
    %c0_112 = arith.constant 0 : index
    %c3 = arith.constant 3 : index
    %c0_113 = arith.constant 0 : index
    %c0_114 = arith.constant 0 : index
    %160 = vector.load %arg1[%c0_112, %c3, %c0_113, %c0_114] : memref<3x4x32x8xbf16, #tpu.memory_space<vmem>>, vector<1x1x32x8xbf16>
    %161 = vector.shape_cast %160 : vector<1x1x32x8xbf16> to vector<32x8xbf16>
    %cst_115 = arith.constant dense<0.000000e+00> : vector<32x8xf32>
    %162 = tpu.matmul %29, %161, %cst_115 {dimension_numbers = #tpu.dot_dimension_numbers<[1], [0], [0], [1], [0, 0, 1, 1], [], []>} : vector<32x32xbf16>, vector<32x8xbf16>, vector<32x8xf32> -> vector<32x8xf32>
    %c0_116 = arith.constant 0 : index
    %c3_117 = arith.constant 3 : index
    %c0_118 = arith.constant 0 : index
    %c0_119 = arith.constant 0 : index
    %163 = vector.load %arg2[%c0_116, %c3_117, %c0_118, %c0_119] : memref<3x4x1x8xf32, #tpu.memory_space<vmem>>, vector<1x1x1x8xf32>
    %164 = vector.shape_cast %163 : vector<1x1x1x8xf32> to vector<1x8xf32>
    %165 = vector.broadcast %164 : vector<1x8xf32> to vector<32x8xf32>
    %166 = arith.addf %162, %165 : vector<32x8xf32>
    %c1_120 = arith.constant 1 : index
    %c3_121 = arith.constant 3 : index
    %c0_122 = arith.constant 0 : index
    %c0_123 = arith.constant 0 : index
    %167 = vector.load %arg1[%c1_120, %c3_121, %c0_122, %c0_123] : memref<3x4x32x8xbf16, #tpu.memory_space<vmem>>, vector<1x1x32x8xbf16>
    %168 = vector.shape_cast %167 : vector<1x1x32x8xbf16> to vector<32x8xbf16>
    %cst_124 = arith.constant dense<0.000000e+00> : vector<32x8xf32>
    %169 = tpu.matmul %29, %168, %cst_124 {dimension_numbers = #tpu.dot_dimension_numbers<[1], [0], [0], [1], [0, 0, 1, 1], [], []>} : vector<32x32xbf16>, vector<32x8xbf16>, vector<32x8xf32> -> vector<32x8xf32>
    %c1_125 = arith.constant 1 : index
    %c3_126 = arith.constant 3 : index
    %c0_127 = arith.constant 0 : index
    %c0_128 = arith.constant 0 : index
    %170 = vector.load %arg2[%c1_125, %c3_126, %c0_127, %c0_128] : memref<3x4x1x8xf32, #tpu.memory_space<vmem>>, vector<1x1x1x8xf32>
    %171 = vector.shape_cast %170 : vector<1x1x1x8xf32> to vector<1x8xf32>
    %172 = vector.broadcast %171 : vector<1x8xf32> to vector<32x8xf32>
    %173 = arith.addf %169, %172 : vector<32x8xf32>
    %c2_129 = arith.constant 2 : index
    %c3_130 = arith.constant 3 : index
    %c0_131 = arith.constant 0 : index
    %c0_132 = arith.constant 0 : index
    %174 = vector.load %arg1[%c2_129, %c3_130, %c0_131, %c0_132] : memref<3x4x32x8xbf16, #tpu.memory_space<vmem>>, vector<1x1x32x8xbf16>
    %175 = vector.shape_cast %174 : vector<1x1x32x8xbf16> to vector<32x8xbf16>
    %cst_133 = arith.constant dense<0.000000e+00> : vector<32x8xf32>
    %176 = tpu.matmul %29, %175, %cst_133 {dimension_numbers = #tpu.dot_dimension_numbers<[1], [0], [0], [1], [0, 0, 1, 1], [], []>} : vector<32x32xbf16>, vector<32x8xbf16>, vector<32x8xf32> -> vector<32x8xf32>
    %c2_134 = arith.constant 2 : index
    %c3_135 = arith.constant 3 : index
    %c0_136 = arith.constant 0 : index
    %c0_137 = arith.constant 0 : index
    %177 = vector.load %arg2[%c2_134, %c3_135, %c0_136, %c0_137] : memref<3x4x1x8xf32, #tpu.memory_space<vmem>>, vector<1x1x1x8xf32>
    %178 = vector.shape_cast %177 : vector<1x1x1x8xf32> to vector<1x8xf32>
    %179 = vector.broadcast %178 : vector<1x8xf32> to vector<32x8xf32>
    %180 = arith.addf %176, %179 : vector<32x8xf32>
    %181 = arith.truncf %166 : vector<32x8xf32> to vector<32x8xbf16>
    %182 = arith.truncf %173 : vector<32x8xf32> to vector<32x8xbf16>
    %cst_138 = arith.constant dense<0.000000e+00> : vector<32x32xf32>
    %183 = tpu.matmul %181, %182, %cst_138 {dimension_numbers = #tpu.dot_dimension_numbers<[1], [1], [0], [0], [0, 0, 1, 0], [], []>} : vector<32x8xbf16>, vector<32x8xbf16>, vector<32x32xf32> -> vector<32x32xf32>
    %184 = arith.addf %183, %10 : vector<32x32xf32>
    %cst_139 = arith.constant dense<0xFF800000> : vector<32xf32>
    %185 = vector.multi_reduction <maximumf>, %184, %cst_139 [1] : vector<32x32xf32> to vector<32xf32>
    %186 = vector.shape_cast %185 : vector<32xf32> to vector<32x1xf32>
    %187 = vector.broadcast %186 : vector<32x1xf32> to vector<32x32xf32>
    %188 = arith.subf %184, %187 : vector<32x32xf32>
    %189 = math.exp %188 : vector<32x32xf32>
    %cst_140 = arith.constant dense<0.000000e+00> : vector<32xf32>
    %190 = vector.multi_reduction <add>, %189, %cst_140 [1] : vector<32x32xf32> to vector<32xf32>
    %191 = vector.shape_cast %190 : vector<32xf32> to vector<32x1xf32>
    %192 = tpu.reciprocal %191 {approx = true} : vector<32x1xf32> -> vector<32x1xf32>
    %193 = vector.broadcast %192 : vector<32x1xf32> to vector<32x32xf32>
    %194 = arith.mulf %189, %193 : vector<32x32xf32>
    %195 = arith.truncf %194 : vector<32x32xf32> to vector<32x32xbf16>
    %196 = arith.truncf %180 : vector<32x8xf32> to vector<32x8xbf16>
    %cst_141 = arith.constant dense<0.000000e+00> : vector<32x8xf32>
    %197 = tpu.matmul %195, %196, %cst_141 {dimension_numbers = #tpu.dot_dimension_numbers<[1], [0], [0], [1], [0, 0, 1, 1], [], []>} : vector<32x32xbf16>, vector<32x8xbf16>, vector<32x8xf32> -> vector<32x8xf32>
    %198 = arith.truncf %197 : vector<32x8xf32> to vector<32x8xbf16>
    %c3_142 = arith.constant 3 : index
    %c0_143 = arith.constant 0 : index
    %c0_144 = arith.constant 0 : index
    %199 = vector.load %arg3[%c3_142, %c0_143, %c0_144] : memref<4x8x32xbf16, #tpu.memory_space<vmem>>, vector<1x8x32xbf16>
    %200 = vector.shape_cast %199 : vector<1x8x32xbf16> to vector<8x32xbf16>
    %cst_145 = arith.constant dense<0.000000e+00> : vector<32x32xf32>
    %201 = tpu.matmul %198, %200, %cst_145 {dimension_numbers = #tpu.dot_dimension_numbers<[1], [0], [0], [1], [0, 0, 1, 1], [], []>} : vector<32x8xbf16>, vector<8x32xbf16>, vector<32x32xf32> -> vector<32x32xf32>
    %202 = arith.addf %159, %201 : vector<32x32xf32>
    %203 = arith.addf %0, %202 : vector<32x32xf32>
    %c0_146 = arith.constant 0 : index
    %c0_147 = arith.constant 0 : index
    %204 = vector.load %arg4[%c0_146, %c0_147] : memref<2x32xf32, #tpu.memory_space<vmem>>, vector<1x32xf32>
    %205 = vector.broadcast %204 : vector<1x32xf32> to vector<32x32xf32>
    %206 = arith.addf %203, %205 : vector<32x32xf32>
    %cst_148 = arith.constant dense<0.000000e+00> : vector<32xf32>
    %207 = vector.multi_reduction <add>, %206, %cst_148 [1] : vector<32x32xf32> to vector<32xf32>
    %208 = vector.shape_cast %207 : vector<32xf32> to vector<32x1xf32>
    %cst_149 = arith.constant 3.200000e+01 : f32
    %209 = vector.broadcast %cst_149 : f32 to vector<32x1xf32>
    %210 = arith.divf %208, %209 : vector<32x1xf32>
    %211 = arith.mulf %206, %206 : vector<32x32xf32>
    %cst_150 = arith.constant dense<0.000000e+00> : vector<32xf32>
    %212 = vector.multi_reduction <add>, %211, %cst_150 [1] : vector<32x32xf32> to vector<32xf32>
    %213 = vector.shape_cast %212 : vector<32xf32> to vector<32x1xf32>
    %cst_151 = arith.constant 3.200000e+01 : f32
    %214 = vector.broadcast %cst_151 : f32 to vector<32x1xf32>
    %215 = arith.divf %213, %214 : vector<32x1xf32>
    %216 = arith.mulf %210, %210 : vector<32x1xf32>
    %217 = arith.subf %215, %216 : vector<32x1xf32>
    %218 = vector.broadcast %210 : vector<32x1xf32> to vector<32x32xf32>
    %219 = arith.subf %206, %218 : vector<32x32xf32>
    %cst_152 = arith.constant 9.99999974E-6 : f32
    %220 = vector.broadcast %cst_152 : f32 to vector<32x1xf32>
    %221 = arith.addf %217, %220 : vector<32x1xf32>
    %222 = math.rsqrt %221 : vector<32x1xf32>
    %223 = vector.broadcast %222 : vector<32x1xf32> to vector<32x32xf32>
    %224 = arith.mulf %219, %223 : vector<32x32xf32>
    %225 = arith.truncf %224 : vector<32x32xf32> to vector<32x32xbf16>
    %c0_153 = arith.constant 0 : index
    %c0_154 = arith.constant 0 : index
    %226 = vector.load %arg5[%c0_153, %c0_154] : memref<32x64xbf16, #tpu.memory_space<vmem>>, vector<32x64xbf16>
    %cst_155 = arith.constant dense<0.000000e+00> : vector<32x64xf32>
    %227 = tpu.matmul %225, %226, %cst_155 {dimension_numbers = #tpu.dot_dimension_numbers<[1], [0], [0], [1], [0, 0, 1, 1], [], []>} : vector<32x32xbf16>, vector<32x64xbf16>, vector<32x64xf32> -> vector<32x64xf32>
    %c0_156 = arith.constant 0 : index
    %c0_157 = arith.constant 0 : index
    %228 = vector.load %arg6[%c0_156, %c0_157] : memref<1x64xf32, #tpu.memory_space<vmem>>, vector<1x64xf32>
    %229 = vector.broadcast %228 : vector<1x64xf32> to vector<32x64xf32>
    %230 = arith.addf %227, %229 : vector<32x64xf32>
    %cst_158 = arith.constant 5.000000e-01 : f32
    %231 = vector.broadcast %cst_158 : f32 to vector<32x64xf32>
    %232 = arith.mulf %231, %230 : vector<32x64xf32>
    %cst_159 = arith.constant 0.707106769 : f32
    %233 = vector.broadcast %cst_159 : f32 to vector<32x64xf32>
    %234 = arith.mulf %230, %233 : vector<32x64xf32>
    %235 = math.erf %234 : vector<32x64xf32>
    %cst_160 = arith.constant 1.000000e+00 : f32
    %236 = vector.broadcast %cst_160 : f32 to vector<32x64xf32>
    %237 = arith.addf %236, %235 : vector<32x64xf32>
    %238 = arith.mulf %232, %237 : vector<32x64xf32>
    %239 = arith.truncf %238 : vector<32x64xf32> to vector<32x64xbf16>
    %c0_161 = arith.constant 0 : index
    %c0_162 = arith.constant 0 : index
    %240 = vector.load %arg7[%c0_161, %c0_162] : memref<64x32xbf16, #tpu.memory_space<vmem>>, vector<64x32xbf16>
    %cst_163 = arith.constant dense<0.000000e+00> : vector<32x32xf32>
    %241 = tpu.matmul %239, %240, %cst_163 {dimension_numbers = #tpu.dot_dimension_numbers<[1], [0], [0], [1], [0, 0, 1, 1], [], []>} : vector<32x64xbf16>, vector<64x32xbf16>, vector<32x32xf32> -> vector<32x32xf32>
    %c1_164 = arith.constant 1 : index
    %c0_165 = arith.constant 0 : index
    %242 = vector.load %arg4[%c1_164, %c0_165] : memref<2x32xf32, #tpu.memory_space<vmem>>, vector<1x32xf32>
    %243 = vector.broadcast %242 : vector<1x32xf32> to vector<32x32xf32>
    %244 = arith.addf %241, %243 : vector<32x32xf32>
    %245 = arith.addf %206, %244 : vector<32x32xf32>
    %c0_166 = arith.constant 0 : index
    %c0_167 = arith.constant 0 : index
    %246 = vector.load %arg8[%c0_166, %c0_167] : memref<32x32xf32, #tpu.memory_space<vmem>>, vector<32x32xf32>
    tpu.vector_store %arg8[%c0_166, %c0_167], %245 {strides = array<i32>} : memref<32x32xf32, #tpu.memory_space<vmem>>, vector<32x32xf32>,
    return
  }
}

</mosaic_0001>

<llo_original>
// kernel: tpu_custom_call.1
$region0: #{tpu_custom_call.1}
  #allocation0 [shape = 'u32[]', space=smem, size = 0x4, offset = 0x4, fixed_abs, tag = 'smem constant byte address 0x4 - core index']
  #allocation1 [shape = 'u32[144,128]{1,0:T(1,128)}', space=vmem, size = 0x12000, scoped, tag = 'internal scratch']
  %s0 = inlined_call_operand.vmem [shape: f32[32,32], index: 0, kind: input, shape index: {}]
  %s1 = inlined_call_operand.vmem [shape: bf16[3,4,32,8], index: 1, kind: input, shape index: {}]
  %s2 = inlined_call_operand.vmem [shape: f32[3,4,1,8], index: 2, kind: input, shape index: {}]
  %s3 = inlined_call_operand.vmem [shape: bf16[4,8,32], index: 3, kind: input, shape index: {}]
  %s4 = inlined_call_operand.vmem [shape: f32[2,32], index: 4, kind: input, shape index: {}]
  %s5 = inlined_call_operand.vmem [shape: bf16[32,64], index: 5, kind: input, shape index: {}]
  %s6 = inlined_call_operand.vmem [shape: f32[1,64], index: 6, kind: input, shape index: {}]
  %s7 = inlined_call_operand.vmem [shape: bf16[64,32], index: 7, kind: input, shape index: {}]
  %s8 = inlined_call_operand.hbm [shape: f32[32,32], index: 8, kind: output, shape index: {}]
  %s9 = sld [smem:[#allocation0]]
  $region42: #{tpu_custom_call.1} parent=0
    _
  %s11 = ssub.s32 1, %s9
  %s12 = scalar_select 0, %s11, %s9
  $region1: #{tpu_custom_call.1} parent=0
    #allocation2 [shape = 'u8[16384]{0}', space=vmem, size = 0x4000, scoped, tag = 'output window, operand 0, single buffered']
    #allocation3 [shape = 's32[1]{0}', space=sflag, size = 0x4, scoped, tag = 'scoped memory for tpu_custom_call.1']
    %13 = vsyncpa [#allocation3], 0
    // Predicated region
    $region2: #{tpu_custom_call.1} parent=1 // pred_check
      _
    $region3: #{tpu_custom_call.1} parent=1 // pred_check_branch
      %15 = sbr.rel (0) target = $region5
    $region4: #{tpu_custom_call.1} parent=1 // pred_region
      _
    $region5: #{tpu_custom_call.1} parent=1 // pred_fallthru
      _
    // Predicated region
    $region6: #{tpu_custom_call.1} parent=1 // pred_check
      _
    $region7: #{tpu_custom_call.1} parent=1 // pred_check_branch
      %17 = sbr.rel (0) target = $region9
    $region8: #{tpu_custom_call.1} parent=1 // pred_region
      _
    $region9: #{tpu_custom_call.1} parent=1 // pred_fallthru
      _
    // Predicated region
    $region10: #{tpu_custom_call.1} parent=1 // pred_check
      _
    $region11: #{tpu_custom_call.1} parent=1 // pred_check_branch
      %19 = sbr.rel (0) target = $region13
    $region12: #{tpu_custom_call.1} parent=1 // pred_region
      _
    $region13: #{tpu_custom_call.1} parent=1 // pred_fallthru
      _
    // Predicated region
    $region14: #{tpu_custom_call.1} parent=1 // pred_check
      _
    $region15: #{tpu_custom_call.1} parent=1 // pred_check_branch
      %21 = sbr.rel (0) target = $region17
    $region16: #{tpu_custom_call.1} parent=1 // pred_region
      _
    $region17: #{tpu_custom_call.1} parent=1 // pred_fallthru
      _
    // Predicated region
    $region18: #{tpu_custom_call.1} parent=1 // pred_check
      _
    $region19: #{tpu_custom_call.1} parent=1 // pred_check_branch
      %23 = sbr.rel (0) target = $region21
    $region20: #{tpu_custom_call.1} parent=1 // pred_region
      _
    $region21: #{tpu_custom_call.1} parent=1 // pred_fallthru
      _
    // Predicated region
    $region22: #{tpu_custom_call.1} parent=1 // pred_check
      _
    $region23: #{tpu_custom_call.1} parent=1 // pred_check_branch
      %25 = sbr.rel (0) target = $region25
    $region24: #{tpu_custom_call.1} parent=1 // pred_region
      _
    $region25: #{tpu_custom_call.1} parent=1 // pred_fallthru
      _
    // Predicated region
    $region26: #{tpu_custom_call.1} parent=1 // pred_check
      _
    $region27: #{tpu_custom_call.1} parent=1 // pred_check_branch
      %27 = sbr.rel (0) target = $region29
    $region28: #{tpu_custom_call.1} parent=1 // pred_region
      _
    $region29: #{tpu_custom_call.1} parent=1 // pred_fallthru
      _
    // Predicated region
    $region30: #{tpu_custom_call.1} parent=1 // pred_check
      _
    $region31: #{tpu_custom_call.1} parent=1 // pred_check_branch
      %29 = sbr.rel (0) target = $region33
    $region32: #{tpu_custom_call.1} parent=1 // pred_region
      _
    $region33: #{tpu_custom_call.1} parent=1 // pred_fallthru
      _
    %v31 = vld [vmem:[%s0] sm:$0xff]
    %v32 = vld [vmem:[%s0 + $0x8] sm:$0xff]
    %v33 = vld [vmem:[%s0 + $0x10] sm:$0xff]
    %v34 = vld [vmem:[%s0 + $0x18] sm:$0xff]
    %v35 = vlaneseq
    %v36 = vshrl.u32 %v35, 7
    %v37 = vadd.s32 %v36, 8
    %v38 = vadd.s32 %v36, 16
    %v39 = vadd.s32 %v36, 24
    %v40 = vlaneseq
    %v41 = vand.u32 %v40, 127
    %v42 = vshra.s32 %v36, 4
    %v43 = vshra.s32 %v37, 4
    %v44 = vshra.s32 %v38, 4
    %v45 = vshra.s32 %v39, 4
    %v46 = vshra.s32 %v41, 4
    %vm47 = vcmp.eq.s32.totalorder %v42, %v46
    %vm48 = vcmp.eq.s32.totalorder %v43, %v46
    %vm49 = vcmp.eq.s32.totalorder %v44, %v46
    %vm50 = vcmp.eq.s32.totalorder %v45, %v46
    %v51 = vsel %vm47, 0.0, -1e+09
    %v52 = vsel %vm48, 0.0, -1e+09
    %v53 = vsel %vm49, 0.0, -1e+09
    %v54 = vsel %vm50, 0.0, -1e+09
    %vm55 = vcmask 261120
    %v56 = vsel %vm55, %v31, 0.0
    %57 = vadd.xlane.f32.xlu0 %v56
    %v58 = vpop.xlane.xlu0 %57
    %v59 = vsel %vm55, %v32, 0.0
    %60 = vadd.xlane.f32.xlu0 %v59
    %v61 = vpop.xlane.xlu0 %60
    %v62 = vsel %vm55, %v33, 0.0
    %63 = vadd.xlane.f32.xlu0 %v62
    %v64 = vpop.xlane.xlu0 %63
    %v65 = vsel %vm55, %v34, 0.0
    %66 = vadd.xlane.f32.xlu0 %v65
    %v67 = vpop.xlane.xlu0 %66
    %v68 = vrcp.pop 32.0
    %v69 = vmul.f32 %v58, %v68
    %v70 = vmul.f32 %v61, %v68
    %v71 = vmul.f32 %v64, %v68
    %v72 = vmul.f32 %v67, %v68
    %v73 = vmul.f32 %v31, %v31
    %v74 = vmul.f32 %v32, %v32
    %v75 = vmul.f32 %v33, %v33
    %v76 = vmul.f32 %v34, %v34
    %v77 = vsel %vm55, %v73, 0.0
    %78 = vadd.xlane.f32.xlu0 %v77
    %v79 = vpop.xlane.xlu0 %78
    %v80 = vsel %vm55, %v74, 0.0
    %81 = vadd.xlane.f32.xlu0 %v80
    %v82 = vpop.xlane.xlu0 %81
    %v83 = vsel %vm55, %v75, 0.0
    %84 = vadd.xlane.f32.xlu0 %v83
    %v85 = vpop.xlane.xlu0 %84
    %v86 = vsel %vm55, %v76, 0.0
    %87 = vadd.xlane.f32.xlu0 %v86
    %v88 = vpop.xlane.xlu0 %87
    %v89 = vmul.f32 %v79, %v68
    %v90 = vmul.f32 %v82, %v68
    %v91 = vmul.f32 %v85, %v68
    %v92 = vmul.f32 %v88, %v68
    %v93 = vmul.f32 %v69, %v69
    %v94 = vmul.f32 %v70, %v70
    %v95 = vmul.f32 %v71, %v71
    %v96 = vmul.f32 %v72, %v72
    %v97 = vsub.f32 %v89, %v93
    %v98 = vsub.f32 %v90, %v94
    %v99 = vsub.f32 %v91, %v95
    %v100 = vsub.f32 %v92, %v96
    %v101 = vsub.f32 %v31, %v69
    %v102 = vsub.f32 %v32, %v70
    %v103 = vsub.f32 %v33, %v71
    %v104 = vsub.f32 %v34, %v72
    %v105 = vadd.f32 %v97, 1e-05
    %v106 = vadd.f32 %v98, 1e-05
    %v107 = vadd.f32 %v99, 1e-05
    %v108 = vadd.f32 %v100, 1e-05
    %v109 = vrsqrt.pop %v105
    %v110 = vrsqrt.pop %v106
    %v111 = vrsqrt.pop %v107
    %v112 = vrsqrt.pop %v108
    %v113 = vmul.f32 %v101, %v109
    %v114 = vmul.f32 %v102, %v110
    %v115 = vmul.f32 %v103, %v111
    %v116 = vmul.f32 %v104, %v112
    %v117 = vpack.c.bf16 %v114, %v113
    %v118 = vpack.c.bf16 %v116, %v115
    %v119 = vld [vmem:[%s1] sm:$0xf]
    %v120 = vld [vmem:[%s1 + $0x4] sm:$0xf]
    %v121 = vld [vmem:[%s1 + $0x8] sm:$0xf]
    %v122 = vld [vmem:[%s1 + $0xc] sm:$0xf]
    %v123 = vld [vmem:[%s2] sm:$0x1]
    %v125 = vlaneseq
    %v126 = vshrl.u32 %v125, 7
    %v127 = vsub.s32 0, %v126
    %v128 = vrot.slane %v123, %v127
    %v134 = vunpack.c.l.b16 %v119
    %v135 = vunpack.c.l.b16 %v120
    %v136 = vunpack.c.l.b16 %v121
    %v137 = vunpack.c.l.b16 %v122
    %v138 = vpack.c.b16 %v135, %v134
    %v139 = vpack.c.b16 %v137, %v136
    %v143 = vsel %vm55, %v117, 0
    %v146 = vsel %vm55, %v118, 0
    %148 = vmatprep.subr.bf16.mxu0 0
    %149 = vmatpush1.bf16.msra.mxu0 0
    %150 = vmatprep.subr.bf16.mxu0 0
    %151 = vmatpush1.bf16.msra.mxu0 0
    %152 = vmatprep.subr.bf16.mxu0 0
    %153 = vmatpush1.bf16.msra.mxu0 0
    %154 = vmatprep.subr.bf16.mxu0 0
    %155 = vmatpush1.bf16.msra.mxu0 0
    %156 = vmatprep.subr.bf16.mxu0 0
    %157 = vmatpush1.bf16.msra.mxu0 0
    %158 = vmatprep.subr.bf16.mxu0 0
    %159 = vmatpush1.bf16.msra.mxu0 0
    %160 = vmatprep.subr.bf16.mxu0 0
    %161 = vmatpush1.bf16.msra.mxu0 %v139
    %162 = vmatprep.subr.bf16.mxu0 0
    %163 = vmatpush1.bf16.msra.mxu0 %v138
    %164 = vmatprep.subr.bf16.mxu0 0
    %165 = vmatpush2.bf16.msra.mxu0 0
    %166 = vmatprep.subr.bf16.mxu0 0
    %167 = vmatpush2.bf16.msra.mxu0 0
    %168 = vmatprep.subr.bf16.mxu0 0
    %169 = vmatpush2.bf16.msra.mxu0 0
    %170 = vmatprep.subr.bf16.mxu0 0
    %171 = vmatpush2.bf16.msra.mxu0 0
    %172 = vmatprep.subr.bf16.mxu0 0
    %173 = vmatpush2.bf16.msra.mxu0 0
    %174 = vmatprep.subr.bf16.mxu0 0
    %175 = vmatpush2.bf16.msra.mxu0 0
    %176 = vmatprep.subr.bf16.mxu0 0
    %177 = vmatpush2.bf16.msra.mxu0 0
    %178 = vmatprep.subr.bf16.mxu0 0
    %179 = vmatpush2.bf16.msra.mxu0 0
    %180 = vmatprep.mubr.bf16.mxu0 0
    %181 = vmatmul.mubr.bf16.gmra.mxu0 %v143
    %v182 = vpop.f32.mrf.mxu0
    %v183 = vadd.f32 %v128, %v182
    %v184 = vpop.f32.mrf.mxu0
    %v185 = vpop.f32.mrf.mxu0
    %v186 = vadd.f32 %v128, %v185
    %v187 = vpop.f32.mrf.mxu0
    %188 = vmatprep.mubr.bf16.mxu0 0
    %189 = vmatmul.mubr.bf16.gmra.mxu0 %v146
    %v190 = vpop.f32.mrf.mxu0
    %v191 = vadd.f32 %v128, %v190
    %v192 = vpop.f32.mrf.mxu0
    %v193 = vpop.f32.mrf.mxu0
    %v194 = vadd.f32 %v128, %v193
    %v195 = vpop.f32.mrf.mxu0
    %196 = vdwg.mxu0
    %s197 = scalar_lea.vmem %s1, 64
    %v198 = vld [vmem:[%s197] sm:$0xf]
    %v199 = vld [vmem:[%s197 + $0x4] sm:$0xf]
    %v200 = vld [vmem:[%s197 + $0x8] sm:$0xf]
    %v201 = vld [vmem:[%s197 + $0xc] sm:$0xf]
    %s202 = scalar_lea.vmem %s2, 4
    %v203 = vld [vmem:[%s202] sm:$0x1]
    %v205 = vlaneseq
    %v206 = vshrl.u32 %v205, 7
    %v207 = vsub.s32 0, %v206
    %v208 = vrot.slane %v203, %v207
    %v214 = vunpack.c.l.b16 %v198
    %v215 = vunpack.c.l.b16 %v199
    %v216 = vunpack.c.l.b16 %v200
    %v217 = vunpack.c.l.b16 %v201
    %v218 = vpack.c.b16 %v215, %v214
    %v219 = vpack.c.b16 %v217, %v216
    %222 = vmatprep.subr.bf16.mxu0 0
    %223 = vmatpush1.bf16.msra.mxu0 0
    %224 = vmatprep.subr.bf16.mxu0 0
    %225 = vmatpush1.bf16.msra.mxu0 0
    %226 = vmatprep.subr.bf16.mxu0 0
    %227 = vmatpush1.bf16.msra.mxu0 0
    %228 = vmatprep.subr.bf16.mxu0 0
    %229 = vmatpush1.bf16.msra.mxu0 0
    %230 = vmatprep.subr.bf16.mxu0 0
    %231 = vmatpush1.bf16.msra.mxu0 0
    %232 = vmatprep.subr.bf16.mxu0 0
    %233 = vmatpush1.bf16.msra.mxu0 0
    %234 = vmatprep.subr.bf16.mxu0 0
    %235 = vmatpush1.bf16.msra.mxu0 %v219
    %236 = vmatprep.subr.bf16.mxu0 0
    %237 = vmatpush1.bf16.msra.mxu0 %v218
    %238 = vmatprep.subr.bf16.mxu0 0
    %239 = vmatpush2.bf16.msra.mxu0 0
    %240 = vmatprep.subr.bf16.mxu0 0
    %241 = vmatpush2.bf16.msra.mxu0 0
    %242 = vmatprep.subr.bf16.mxu0 0
    %243 = vmatpush2.bf16.msra.mxu0 0
    %244 = vmatprep.subr.bf16.mxu0 0
    %245 = vmatpush2.bf16.msra.mxu0 0
    %246 = vmatprep.subr.bf16.mxu0 0
    %247 = vmatpush2.bf16.msra.mxu0 0
    %248 = vmatprep.subr.bf16.mxu0 0
    %249 = vmatpush2.bf16.msra.mxu0 0
    %250 = vmatprep.subr.bf16.mxu0 0
    %251 = vmatpush2.bf16.msra.mxu0 0
    %252 = vmatprep.subr.bf16.mxu0 0
    %253 = vmatpush2.bf16.msra.mxu0 0
    %254 = vmatprep.mubr.bf16.mxu0 0
    %255 = vmatmul.mubr.bf16.gmra.mxu0 %v143
    %v256 = vpop.f32.mrf.mxu0
    %v257 = vadd.f32 %v208, %v256
    %v258 = vpop.f32.mrf.mxu0
    %v259 = vpop.f32.mrf.mxu0
    %v260 = vadd.f32 %v208, %v259
    %v261 = vpop.f32.mrf.mxu0
    %262 = vmatprep.mubr.bf16.mxu0 0
    %263 = vmatmul.mubr.bf16.gmra.mxu0 %v146
    %v264 = vpop.f32.mrf.mxu0
    %v265 = vadd.f32 %v208, %v264
    %v266 = vpop.f32.mrf.mxu0
    %v267 = vpop.f32.mrf.mxu0
    %v268 = vadd.f32 %v208, %v267
    %v269 = vpop.f32.mrf.mxu0
    %270 = vdwg.mxu0
    %s271 = scalar_lea.vmem %s1, 128
    %v272 = vld [vmem:[%s271] sm:$0xf]
    %v273 = vld [vmem:[%s271 + $0x4] sm:$0xf]
    %v274 = vld [vmem:[%s271 + $0x8] sm:$0xf]
    %v275 = vld [vmem:[%s271 + $0xc] sm:$0xf]
    %s276 = scalar_lea.vmem %s2, 8
    %v277 = vld [vmem:[%s276] sm:$0x1]
    %v279 = vlaneseq
    %v280 = vshrl.u32 %v279, 7
    %v281 = vsub.s32 0, %v280
    %v282 = vrot.slane %v277, %v281
    %v288 = vunpack.c.l.b16 %v272
    %v289 = vunpack.c.l.b16 %v273
    %v290 = vunpack.c.l.b16 %v274
    %v291 = vunpack.c.l.b16 %v275
    %v292 = vpack.c.b16 %v289, %v288
    %v293 = vpack.c.b16 %v291, %v290
    %296 = vmatprep.subr.bf16.mxu0 0
    %297 = vmatpush1.bf16.msra.mxu0 0
    %298 = vmatprep.subr.bf16.mxu0 0
    %299 = vmatpush1.bf16.msra.mxu0 0
    %300 = vmatprep.subr.bf16.mxu0 0
    %301 = vmatpush1.bf16.msra.mxu0 0
    %302 = vmatprep.subr.bf16.mxu0 0
    %303 = vmatpush1.bf16.msra.mxu0 0
    %304 = vmatprep.subr.bf16.mxu0 0
    %305 = vmatpush1.bf16.msra.mxu0 0
    %306 = vmatprep.subr.bf16.mxu0 0
    %307 = vmatpush1.bf16.msra.mxu0 0
    %308 = vmatprep.subr.bf16.mxu0 0
    %309 = vmatpush1.bf16.msra.mxu0 %v293
    %310 = vmatprep.subr.bf16.mxu0 0
    %311 = vmatpush1.bf16.msra.mxu0 %v292
    %312 = vmatprep.subr.bf16.mxu0 0
    %313 = vmatpush2.bf16.msra.mxu0 0
    %314 = vmatprep.subr.bf16.mxu0 0
    %315 = vmatpush2.bf16.msra.mxu0 0
    %316 = vmatprep.subr.bf16.mxu0 0
    %317 = vmatpush2.bf16.msra.mxu0 0
    %318 = vmatprep.subr.bf16.mxu0 0
    %319 = vmatpush2.bf16.msra.mxu0 0
    %320 = vmatprep.subr.bf16.mxu0 0
    %321 = vmatpush2.bf16.msra.mxu0 0
    %322 = vmatprep.subr.bf16.mxu0 0
    %323 = vmatpush2.bf16.msra.mxu0 0
    %324 = vmatprep.subr.bf16.mxu0 0
    %325 = vmatpush2.bf16.msra.mxu0 0
    %326 = vmatprep.subr.bf16.mxu0 0
    %327 = vmatpush2.bf16.msra.mxu0 0
    %328 = vmatprep.mubr.bf16.mxu0 0
    %329 = vmatmul.mubr.bf16.gmra.mxu0 %v143
    %v330 = vpop.f32.mrf.mxu0
    %v331 = vadd.f32 %v282, %v330
    %v332 = vpop.f32.mrf.mxu0
    %v333 = vpop.f32.mrf.mxu0
    %v334 = vadd.f32 %v282, %v333
    %v335 = vpop.f32.mrf.mxu0
    %336 = vmatprep.mubr.bf16.mxu0 0
    %337 = vmatmul.mubr.bf16.gmra.mxu0 %v146
    %v338 = vpop.f32.mrf.mxu0
    %v339 = vadd.f32 %v282, %v338
    %v340 = vpop.f32.mrf.mxu0
    %v341 = vpop.f32.mrf.mxu0
    %v342 = vadd.f32 %v282, %v341
    %v343 = vpop.f32.mrf.mxu0
    %344 = vdwg.mxu0
    %v345 = vpack.c.bf16 %v186, %v183
    %v346 = vpack.c.bf16 %v194, %v191
    %v347 = vpack.c.bf16 %v260, %v257
    %v348 = vpack.c.bf16 %v268, %v265
    %vm349 = vcmask 64512
    %v351 = vsel %vm349, %v345, 0
    %v354 = vsel %vm349, %v346, 0
    %v357 = vsel %vm349, %v347, 0
    %v360 = vsel %vm349, %v348, 0
    %362 = vmatprep.subr.bf16.mxu0 0
    %363 = vmatpush1.bf16.xpose.msra.mxu0 0
    %364 = vmatprep.subr.bf16.mxu0 0
    %365 = vmatpush1.bf16.xpose.msra.mxu0 0
    %366 = vmatprep.subr.bf16.mxu0 0
    %367 = vmatpush1.bf16.xpose.msra.mxu0 0
    %368 = vmatprep.subr.bf16.mxu0 0
    %369 = vmatpush1.bf16.xpose.msra.mxu0 0
    %370 = vmatprep.subr.bf16.mxu0 0
    %371 = vmatpush1.bf16.xpose.msra.mxu0 0
    %372 = vmatprep.subr.bf16.mxu0 0
    %373 = vmatpush1.bf16.xpose.msra.mxu0 0
    %374 = vmatprep.subr.bf16.mxu0 0
    %375 = vmatpush1.bf16.xpose.msra.mxu0 %v360
    %376 = vmatprep.subr.bf16.mxu0 0
    %377 = vmatpush1.bf16.xpose.msra.mxu0 %v357
    %378 = vmatprep.subr.bf16.mxu0 0
    %379 = vmatpush2.bf16.xpose.msra.mxu0 0
    %380 = vmatprep.subr.bf16.mxu0 0
    %381 = vmatpush2.bf16.xpose.msra.mxu0 0
    %382 = vmatprep.subr.bf16.mxu0 0
    %383 = vmatpush2.bf16.xpose.msra.mxu0 0
    %384 = vmatprep.subr.bf16.mxu0 0
    %385 = vmatpush2.bf16.xpose.msra.mxu0 0
    %386 = vmatprep.subr.bf16.mxu0 0
    %387 = vmatpush2.bf16.xpose.msra.mxu0 0
    %388 = vmatprep.subr.bf16.mxu0 0
    %389 = vmatpush2.bf16.xpose.msra.mxu0 0
    %390 = vmatprep.subr.bf16.mxu0 0
    %391 = vmatpush2.bf16.xpose.msra.mxu0 0
    %392 = vmatprep.subr.bf16.mxu0 0
    %393 = vmatpush2.bf16.xpose.msra.mxu0 0
    %394 = vmatprep.mubr.bf16.mxu0 0
    %395 = vmatmul.mubr.bf16.gmra.mxu0 %v351
    %v396 = vpop.f32.mrf.mxu0
    %v397 = vadd.f32 %v51, %v396
    %v398 = vpop.f32.mrf.mxu0
    %v399 = vpop.f32.mrf.mxu0
    %v400 = vadd.f32 %v52, %v399
    %v401 = vpop.f32.mrf.mxu0
    %402 = vmatprep.mubr.bf16.mxu0 0
    %403 = vmatmul.mubr.bf16.gmra.mxu0 %v354
    %v404 = vpop.f32.mrf.mxu0
    %v405 = vadd.f32 %v53, %v404
    %v406 = vpop.f32.mrf.mxu0
    %v407 = vpop.f32.mrf.mxu0
    %v408 = vadd.f32 %v54, %v407
    %v409 = vpop.f32.mrf.mxu0
    %410 = vdwg.mxu0
    %v411 = vsel %vm55, %v397, -inf
    %412 = vmax.xlane.f32.xlu0 %v411
    %v413 = vpop.xlane.xlu0 %412
    %v414 = vsel %vm55, %v400, -inf
    %415 = vmax.xlane.f32.xlu0 %v414
    %v416 = vpop.xlane.xlu0 %415
    %v417 = vsel %vm55, %v405, -inf
    %418 = vmax.xlane.f32.xlu0 %v417
    %v419 = vpop.xlane.xlu0 %418
    %v420 = vsel %vm55, %v408, -inf
    %421 = vmax.xlane.f32.xlu0 %v420
    %v422 = vpop.xlane.xlu0 %421
    %v423 = vsub.f32 %v397, %v413
    %v424 = vsub.f32 %v400, %v416
    %v425 = vsub.f32 %v405, %v419
    %v426 = vsub.f32 %v408, %v422
    %v427 = vmul.f32 %v423, 1.442695
    %v428 = vpow.pop %v427
    %v429 = vmul.f32 %v424, 1.442695
    %v430 = vpow.pop %v429
    %v431 = vmul.f32 %v425, 1.442695
    %v432 = vpow.pop %v431
    %v433 = vmul.f32 %v426, 1.442695
    %v434 = vpow.pop %v433
    %v435 = vsel %vm55, %v428, 0.0
    %436 = vadd.xlane.f32.xlu0 %v435
    %v437 = vpop.xlane.xlu0 %436
    %v438 = vsel %vm55, %v430, 0.0
    %439 = vadd.xlane.f32.xlu0 %v438
    %v440 = vpop.xlane.xlu0 %439
    %v441 = vsel %vm55, %v432, 0.0
    %442 = vadd.xlane.f32.xlu0 %v441
    %v443 = vpop.xlane.xlu0 %442
    %v444 = vsel %vm55, %v434, 0.0
    %445 = vadd.xlane.f32.xlu0 %v444
    %v446 = vpop.xlane.xlu0 %445
    %v447 = vrcp.pop %v437
    %v448 = vrcp.pop %v440
    %v449 = vrcp.pop %v443
    %v450 = vrcp.pop %v446
    %v451 = vmul.f32 %v428, %v447
    %v452 = vmul.f32 %v430, %v448
    %v453 = vmul.f32 %v432, %v449
    %v454 = vmul.f32 %v434, %v450
    %v455 = vpack.c.bf16 %v452, %v451
    %v456 = vpack.c.bf16 %v454, %v453
    %v457 = vpack.c.bf16 %v334, %v331
    %v458 = vpack.c.bf16 %v342, %v339
    %v460 = vsel %vm55, %v455, 0
    %v463 = vsel %vm55, %v456, 0
    %465 = vmatprep.subr.bf16.mxu0 0
    %466 = vmatpush1.bf16.msra.mxu0 0
    %467 = vmatprep.subr.bf16.mxu0 0
    %468 = vmatpush1.bf16.msra.mxu0 0
    %469 = vmatprep.subr.bf16.mxu0 0
    %470 = vmatpush1.bf16.msra.mxu0 0
    %471 = vmatprep.subr.bf16.mxu0 0
    %472 = vmatpush1.bf16.msra.mxu0 0
    %473 = vmatprep.subr.bf16.mxu0 0
    %474 = vmatpush1.bf16.msra.mxu0 0
    %475 = vmatprep.subr.bf16.mxu0 0
    %476 = vmatpush1.bf16.msra.mxu0 0
    %477 = vmatprep.subr.bf16.mxu0 0
    %478 = vmatpush1.bf16.msra.mxu0 %v458
    %479 = vmatprep.subr.bf16.mxu0 0
    %480 = vmatpush1.bf16.msra.mxu0 %v457
    %481 = vmatprep.subr.bf16.mxu0 0
    %482 = vmatpush2.bf16.msra.mxu0 0
    %483 = vmatprep.subr.bf16.mxu0 0
    %484 = vmatpush2.bf16.msra.mxu0 0
    %485 = vmatprep.subr.bf16.mxu0 0
    %486 = vmatpush2.bf16.msra.mxu0 0
    %487 = vmatprep.subr.bf16.mxu0 0
    %488 = vmatpush2.bf16.msra.mxu0 0
    %489 = vmatprep.subr.bf16.mxu0 0
    %490 = vmatpush2.bf16.msra.mxu0 0
    %491 = vmatprep.subr.bf16.mxu0 0
    %492 = vmatpush2.bf16.msra.mxu0 0
    %493 = vmatprep.subr.bf16.mxu0 0
    %494 = vmatpush2.bf16.msra.mxu0 0
    %495 = vmatprep.subr.bf16.mxu0 0
    %496 = vmatpush2.bf16.msra.mxu0 0
    %497 = vmatprep.mubr.bf16.mxu0 0
    %498 = vmatmul.mubr.bf16.gmra.mxu0 %v460
    %v499 = vpop.f32.mrf.mxu0
    %v500 = vadd.f32 0.0, %v499
    %v501 = vpop.f32.mrf.mxu0
    %v502 = vpop.f32.mrf.mxu0
    %v503 = vadd.f32 0.0, %v502
    %v504 = vpop.f32.mrf.mxu0
    %505 = vmatprep.mubr.bf16.mxu0 0
    %506 = vmatmul.mubr.bf16.gmra.mxu0 %v463
    %v507 = vpop.f32.mrf.mxu0
    %v508 = vadd.f32 0.0, %v507
    %v509 = vpop.f32.mrf.mxu0
    %v510 = vpop.f32.mrf.mxu0
    %v511 = vadd.f32 0.0, %v510
    %v512 = vpop.f32.mrf.mxu0
    %513 = vdwg.mxu0
    %v514 = vpack.c.bf16 %v503, %v500
    %v515 = vpack.c.bf16 %v511, %v508
    %v516 = vld [vmem:[%s3] sm:$0xf]
    %s517 = scalar_lea.vmem %s1, 16
    %v518 = vld [vmem:[%s517] sm:$0xf]
    %v519 = vld [vmem:[%s517 + $0x4] sm:$0xf]
    %v520 = vld [vmem:[%s517 + $0x8] sm:$0xf]
    %v521 = vld [vmem:[%s517 + $0xc] sm:$0xf]
    %s522 = scalar_lea.vmem %s2, 1
    %v523 = vld [vmem:[%s522] sm:$0x1]
    %v525 = vlaneseq
    %v526 = vshrl.u32 %v525, 7
    %v527 = vsub.s32 0, %v526
    %v528 = vrot.slane %v523, %v527
    %v534 = vunpack.c.l.b16 %v518
    %v535 = vunpack.c.l.b16 %v519
    %v536 = vunpack.c.l.b16 %v520
    %v537 = vunpack.c.l.b16 %v521
    %v538 = vpack.c.b16 %v535, %v534
    %v539 = vpack.c.b16 %v537, %v536
    %542 = vmatprep.subr.bf16.mxu0 0
    %543 = vmatpush1.bf16.msra.mxu0 0
    %544 = vmatprep.subr.bf16.mxu0 0
    %545 = vmatpush1.bf16.msra.mxu0 0
    %546 = vmatprep.subr.bf16.mxu0 0
    %547 = vmatpush1.bf16.msra.mxu0 0
    %548 = vmatprep.subr.bf16.mxu0 0
    %549 = vmatpush1.bf16.msra.mxu0 0
    %550 = vmatprep.subr.bf16.mxu0 0
    %551 = vmatpush1.bf16.msra.mxu0 0
    %552 = vmatprep.subr.bf16.mxu0 0
    %553 = vmatpush1.bf16.msra.mxu0 0
    %554 = vmatprep.subr.bf16.mxu0 0
    %555 = vmatpush1.bf16.msra.mxu0 %v539
    %556 = vmatprep.subr.bf16.mxu0 0
    %557 = vmatpush1.bf16.msra.mxu0 %v538
    %558 = vmatprep.subr.bf16.mxu0 0
    %559 = vmatpush2.bf16.msra.mxu0 0
    %560 = vmatprep.subr.bf16.mxu0 0
    %561 = vmatpush2.bf16.msra.mxu0 0
    %562 = vmatprep.subr.bf16.mxu0 0
    %563 = vmatpush2.bf16.msra.mxu0 0
    %564 = vmatprep.subr.bf16.mxu0 0
    %565 = vmatpush2.bf16.msra.mxu0 0
    %566 = vmatprep.subr.bf16.mxu0 0
    %567 = vmatpush2.bf16.msra.mxu0 0
    %568 = vmatprep.subr.bf16.mxu0 0
    %569 = vmatpush2.bf16.msra.mxu0 0
    %570 = vmatprep.subr.bf16.mxu0 0
    %571 = vmatpush2.bf16.msra.mxu0 0
    %572 = vmatprep.subr.bf16.mxu0 0
    %573 = vmatpush2.bf16.msra.mxu0 0
    %574 = vmatprep.mubr.bf16.mxu0 0
    %575 = vmatmul.mubr.bf16.gmra.mxu0 %v143
    %v576 = vpop.f32.mrf.mxu0
    %v577 = vadd.f32 %v528, %v576
    %v578 = vpop.f32.mrf.mxu0
    %v579 = vpop.f32.mrf.mxu0
    %v580 = vadd.f32 %v528, %v579
    %v581 = vpop.f32.mrf.mxu0
    %582 = vmatprep.mubr.bf16.mxu0 0
    %583 = vmatmul.mubr.bf16.gmra.mxu0 %v146
    %v584 = vpop.f32.mrf.mxu0
    %v585 = vadd.f32 %v528, %v584
    %v586 = vpop.f32.mrf.mxu0
    %v587 = vpop.f32.mrf.mxu0
    %v588 = vadd.f32 %v528, %v587
    %v589 = vpop.f32.mrf.mxu0
    %590 = vdwg.mxu0
    %s591 = scalar_lea.vmem %s1, 80
    %v592 = vld [vmem:[%s591] sm:$0xf]
    %v593 = vld [vmem:[%s591 + $0x4] sm:$0xf]
    %v594 = vld [vmem:[%s591 + $0x8] sm:$0xf]
    %v595 = vld [vmem:[%s591 + $0xc] sm:$0xf]
    %s596 = scalar_lea.vmem %s2, 5
    %v597 = vld [vmem:[%s596] sm:$0x1]
    %v599 = vlaneseq
    %v600 = vshrl.u32 %v599, 7
    %v601 = vsub.s32 0, %v600
    %v602 = vrot.slane %v597, %v601
    %v608 = vunpack.c.l.b16 %v592
    %v609 = vunpack.c.l.b16 %v593
    %v610 = vunpack.c.l.b16 %v594
    %v611 = vunpack.c.l.b16 %v595
    %v612 = vpack.c.b16 %v609, %v608
    %v613 = vpack.c.b16 %v611, %v610
    %616 = vmatprep.subr.bf16.mxu0 0
    %617 = vmatpush1.bf16.msra.mxu0 0
    %618 = vmatprep.subr.bf16.mxu0 0
    %619 = vmatpush1.bf16.msra.mxu0 0
    %620 = vmatprep.subr.bf16.mxu0 0
    %621 = vmatpush1.bf16.msra.mxu0 0
    %622 = vmatprep.subr.bf16.mxu0 0
    %623 = vmatpush1.bf16.msra.mxu0 0
    %624 = vmatprep.subr.bf16.mxu0 0
    %625 = vmatpush1.bf16.msra.mxu0 0
    %626 = vmatprep.subr.bf16.mxu0 0
    %627 = vmatpush1.bf16.msra.mxu0 0
    %628 = vmatprep.subr.bf16.mxu0 0
    %629 = vmatpush1.bf16.msra.mxu0 %v613
    %630 = vmatprep.subr.bf16.mxu0 0
    %631 = vmatpush1.bf16.msra.mxu0 %v612
    %632 = vmatprep.subr.bf16.mxu0 0
    %633 = vmatpush2.bf16.msra.mxu0 0
    %634 = vmatprep.subr.bf16.mxu0 0
    %635 = vmatpush2.bf16.msra.mxu0 0
    %636 = vmatprep.subr.bf16.mxu0 0
    %637 = vmatpush2.bf16.msra.mxu0 0
    %638 = vmatprep.subr.bf16.mxu0 0
    %639 = vmatpush2.bf16.msra.mxu0 0
    %640 = vmatprep.subr.bf16.mxu0 0
    %641 = vmatpush2.bf16.msra.mxu0 0
    %642 = vmatprep.subr.bf16.mxu0 0
    %643 = vmatpush2.bf16.msra.mxu0 0
    %644 = vmatprep.subr.bf16.mxu0 0
    %645 = vmatpush2.bf16.msra.mxu0 0
    %646 = vmatprep.subr.bf16.mxu0 0
    %647 = vmatpush2.bf16.msra.mxu0 0
    %648 = vmatprep.mubr.bf16.mxu0 0
    %649 = vmatmul.mubr.bf16.gmra.mxu0 %v143
    %v650 = vpop.f32.mrf.mxu0
    %v651 = vadd.f32 %v602, %v650
    %v652 = vpop.f32.mrf.mxu0
    %v653 = vpop.f32.mrf.mxu0
    %v654 = vadd.f32 %v602, %v653
    %v655 = vpop.f32.mrf.mxu0
    %656 = vmatprep.mubr.bf16.mxu0 0
    %657 = vmatmul.mubr.bf16.gmra.mxu0 %v146
    %v658 = vpop.f32.mrf.mxu0
    %v659 = vadd.f32 %v602, %v658
    %v660 = vpop.f32.mrf.mxu0
    %v661 = vpop.f32.mrf.mxu0
    %v662 = vadd.f32 %v602, %v661
    %v663 = vpop.f32.mrf.mxu0
    %664 = vdwg.mxu0
    %s665 = scalar_lea.vmem %s1, 144
    %v666 = vld [vmem:[%s665] sm:$0xf]
    %v667 = vld [vmem:[%s665 + $0x4] sm:$0xf]
    %v668 = vld [vmem:[%s665 + $0x8] sm:$0xf]
    %v669 = vld [vmem:[%s665 + $0xc] sm:$0xf]
    %s670 = scalar_lea.vmem %s2, 9
    %v671 = vld [vmem:[%s670] sm:$0x1]
    %v673 = vlaneseq
    %v674 = vshrl.u32 %v673, 7
    %v675 = vsub.s32 0, %v674
    %v676 = vrot.slane %v671, %v675
    %v682 = vunpack.c.l.b16 %v666
    %v683 = vunpack.c.l.b16 %v667
    %v684 = vunpack.c.l.b16 %v668
    %v685 = vunpack.c.l.b16 %v669
    %v686 = vpack.c.b16 %v683, %v682
    %v687 = vpack.c.b16 %v685, %v684
    %690 = vmatprep.subr.bf16.mxu0 0
    %691 = vmatpush1.bf16.msra.mxu0 0
    %692 = vmatprep.subr.bf16.mxu0 0
    %693 = vmatpush1.bf16.msra.mxu0 0
    %694 = vmatprep.subr.bf16.mxu0 0
    %695 = vmatpush1.bf16.msra.mxu0 0
    %696 = vmatprep.subr.bf16.mxu0 0
    %697 = vmatpush1.bf16.msra.mxu0 0
    %698 = vmatprep.subr.bf16.mxu0 0
    %699 = vmatpush1.bf16.msra.mxu0 0
    %700 = vmatprep.subr.bf16.mxu0 0
    %701 = vmatpush1.bf16.msra.mxu0 0
    %702 = vmatprep.subr.bf16.mxu0 0
    %703 = vmatpush1.bf16.msra.mxu0 %v687
    %704 = vmatprep.subr.bf16.mxu0 0
    %705 = vmatpush1.bf16.msra.mxu0 %v686
    %706 = vmatprep.subr.bf16.mxu0 0
    %707 = vmatpush2.bf16.msra.mxu0 0
    %708 = vmatprep.subr.bf16.mxu0 0
    %709 = vmatpush2.bf16.msra.mxu0 0
    %710 = vmatprep.subr.bf16.mxu0 0
    %711 = vmatpush2.bf16.msra.mxu0 0
    %712 = vmatprep.subr.bf16.mxu0 0
    %713 = vmatpush2.bf16.msra.mxu0 0
    %714 = vmatprep.subr.bf16.mxu0 0
    %715 = vmatpush2.bf16.msra.mxu0 0
    %716 = vmatprep.subr.bf16.mxu0 0
    %717 = vmatpush2.bf16.msra.mxu0 0
    %718 = vmatprep.subr.bf16.mxu0 0
    %719 = vmatpush2.bf16.msra.mxu0 0
    %720 = vmatprep.subr.bf16.mxu0 0
    %721 = vmatpush2.bf16.msra.mxu0 0
    %722 = vmatprep.mubr.bf16.mxu0 0
    %723 = vmatmul.mubr.bf16.gmra.mxu0 %v143
    %v724 = vpop.f32.mrf.mxu0
    %v725 = vadd.f32 %v676, %v724
    %v726 = vpop.f32.mrf.mxu0
    %v727 = vpop.f32.mrf.mxu0
    %v728 = vadd.f32 %v676, %v727
    %v729 = vpop.f32.mrf.mxu0
    %730 = vmatprep.mubr.bf16.mxu0 0
    %731 = vmatmul.mubr.bf16.gmra.mxu0 %v146
    %v732 = vpop.f32.mrf.mxu0
    %v733 = vadd.f32 %v676, %v732
    %v734 = vpop.f32.mrf.mxu0
    %v735 = vpop.f32.mrf.mxu0
    %v736 = vadd.f32 %v676, %v735
    %v737 = vpop.f32.mrf.mxu0
    %738 = vdwg.mxu0
    %v739 = vpack.c.bf16 %v580, %v577
    %v740 = vpack.c.bf16 %v588, %v585
    %v741 = vpack.c.bf16 %v654, %v651
    %v742 = vpack.c.bf16 %v662, %v659
    %v744 = vsel %vm349, %v739, 0
    %v747 = vsel %vm349, %v740, 0
    %v750 = vsel %vm349, %v741, 0
    %v753 = vsel %vm349, %v742, 0
    %755 = vmatprep.subr.bf16.mxu0 0
    %756 = vmatpush1.bf16.xpose.msra.mxu0 0
    %757 = vmatprep.subr.bf16.mxu0 0
    %758 = vmatpush1.bf16.xpose.msra.mxu0 0
    %759 = vmatprep.subr.bf16.mxu0 0
    %760 = vmatpush1.bf16.xpose.msra.mxu0 0
    %761 = vmatprep.subr.bf16.mxu0 0
    %762 = vmatpush1.bf16.xpose.msra.mxu0 0
    %763 = vmatprep.subr.bf16.mxu0 0
    %764 = vmatpush1.bf16.xpose.msra.mxu0 0
    %765 = vmatprep.subr.bf16.mxu0 0
    %766 = vmatpush1.bf16.xpose.msra.mxu0 0
    %767 = vmatprep.subr.bf16.mxu0 0
    %768 = vmatpush1.bf16.xpose.msra.mxu0 %v753
    %769 = vmatprep.subr.bf16.mxu0 0
    %770 = vmatpush1.bf16.xpose.msra.mxu0 %v750
    %771 = vmatprep.subr.bf16.mxu0 0
    %772 = vmatpush2.bf16.xpose.msra.mxu0 0
    %773 = vmatprep.subr.bf16.mxu0 0
    %774 = vmatpush2.bf16.xpose.msra.mxu0 0
    %775 = vmatprep.subr.bf16.mxu0 0
    %776 = vmatpush2.bf16.xpose.msra.mxu0 0
    %777 = vmatprep.subr.bf16.mxu0 0
    %778 = vmatpush2.bf16.xpose.msra.mxu0 0
    %779 = vmatprep.subr.bf16.mxu0 0
    %780 = vmatpush2.bf16.xpose.msra.mxu0 0
    %781 = vmatprep.subr.bf16.mxu0 0
    %782 = vmatpush2.bf16.xpose.msra.mxu0 0
    %783 = vmatprep.subr.bf16.mxu0 0
    %784 = vmatpush2.bf16.xpose.msra.mxu0 0
    %785 = vmatprep.subr.bf16.mxu0 0
    %786 = vmatpush2.bf16.xpose.msra.mxu0 0
    %787 = vmatprep.mubr.bf16.mxu0 0
    %788 = vmatmul.mubr.bf16.gmra.mxu0 %v744
    %v789 = vpop.f32.mrf.mxu0
    %v790 = vadd.f32 %v51, %v789
    %v791 = vpop.f32.mrf.mxu0
    %v792 = vpop.f32.mrf.mxu0
    %v793 = vadd.f32 %v52, %v792
    %v794 = vpop.f32.mrf.mxu0
    %795 = vmatprep.mubr.bf16.mxu0 0
    %796 = vmatmul.mubr.bf16.gmra.mxu0 %v747
    %v797 = vpop.f32.mrf.mxu0
    %v798 = vadd.f32 %v53, %v797
    %v799 = vpop.f32.mrf.mxu0
    %v800 = vpop.f32.mrf.mxu0
    %v801 = vadd.f32 %v54, %v800
    %v802 = vpop.f32.mrf.mxu0
    %803 = vdwg.mxu0
    %v804 = vsel %vm55, %v790, -inf
    %805 = vmax.xlane.f32.xlu0 %v804
    %v806 = vpop.xlane.xlu0 %805
    %v807 = vsel %vm55, %v793, -inf
    %808 = vmax.xlane.f32.xlu0 %v807
    %v809 = vpop.xlane.xlu0 %808
    %v810 = vsel %vm55, %v798, -inf
    %811 = vmax.xlane.f32.xlu0 %v810
    %v812 = vpop.xlane.xlu0 %811
    %v813 = vsel %vm55, %v801, -inf
    %814 = vmax.xlane.f32.xlu0 %v813
    %v815 = vpop.xlane.xlu0 %814
    %v816 = vsub.f32 %v790, %v806
    %v817 = vsub.f32 %v793, %v809
    %v818 = vsub.f32 %v798, %v812
    %v819 = vsub.f32 %v801, %v815
    %v820 = vmul.f32 %v816, 1.442695
    %v821 = vpow.pop %v820
    %v822 = vmul.f32 %v817, 1.442695
    %v823 = vpow.pop %v822
    %v824 = vmul.f32 %v818, 1.442695
    %v825 = vpow.pop %v824
    %v826 = vmul.f32 %v819, 1.442695
    %v827 = vpow.pop %v826
    %v828 = vsel %vm55, %v821, 0.0
    %829 = vadd.xlane.f32.xlu0 %v828
    %v830 = vpop.xlane.xlu0 %829
    %v831 = vsel %vm55, %v823, 0.0
    %832 = vadd.xlane.f32.xlu0 %v831
    %v833 = vpop.xlane.xlu0 %832
    %v834 = vsel %vm55, %v825, 0.0
    %835 = vadd.xlane.f32.xlu0 %v834
    %v836 = vpop.xlane.xlu0 %835
    %v837 = vsel %vm55, %v827, 0.0
    %838 = vadd.xlane.f32.xlu0 %v837
    %v839 = vpop.xlane.xlu0 %838
    %v840 = vrcp.pop %v830
    %v841 = vrcp.pop %v833
    %v842 = vrcp.pop %v836
    %v843 = vrcp.pop %v839
    %v844 = vmul.f32 %v821, %v840
    %v845 = vmul.f32 %v823, %v841
    %v846 = vmul.f32 %v825, %v842
    %v847 = vmul.f32 %v827, %v843
    %v848 = vpack.c.bf16 %v845, %v844
    %v849 = vpack.c.bf16 %v847, %v846
    %v850 = vpack.c.bf16 %v728, %v725
    %v851 = vpack.c.bf16 %v736, %v733
    %v853 = vsel %vm55, %v848, 0
    %v856 = vsel %vm55, %v849, 0
    %858 = vmatprep.subr.bf16.mxu0 0
    %859 = vmatpush1.bf16.msra.mxu0 0
    %860 = vmatprep.subr.bf16.mxu0 0
    %861 = vmatpush1.bf16.msra.mxu0 0
    %862 = vmatprep.subr.bf16.mxu0 0
    %863 = vmatpush1.bf16.msra.mxu0 0
    %864 = vmatprep.subr.bf16.mxu0 0
    %865 = vmatpush1.bf16.msra.mxu0 0
    %866 = vmatprep.subr.bf16.mxu0 0
    %867 = vmatpush1.bf16.msra.mxu0 0
    %868 = vmatprep.subr.bf16.mxu0 0
    %869 = vmatpush1.bf16.msra.mxu0 0
    %870 = vmatprep.subr.bf16.mxu0 0
    %871 = vmatpush1.bf16.msra.mxu0 %v851
    %872 = vmatprep.subr.bf16.mxu0 0
    %873 = vmatpush1.bf16.msra.mxu0 %v850
    %874 = vmatprep.subr.bf16.mxu0 0
    %875 = vmatpush2.bf16.msra.mxu0 0
    %876 = vmatprep.subr.bf16.mxu0 0
    %877 = vmatpush2.bf16.msra.mxu0 0
    %878 = vmatprep.subr.bf16.mxu0 0
    %879 = vmatpush2.bf16.msra.mxu0 0
    %880 = vmatprep.subr.bf16.mxu0 0
    %881 = vmatpush2.bf16.msra.mxu0 0
    %882 = vmatprep.subr.bf16.mxu0 0
    %883 = vmatpush2.bf16.msra.mxu0 0
    %884 = vmatprep.subr.bf16.mxu0 0
    %885 = vmatpush2.bf16.msra.mxu0 0
    %886 = vmatprep.subr.bf16.mxu0 0
    %887 = vmatpush2.bf16.msra.mxu0 0
    %888 = vmatprep.subr.bf16.mxu0 0
    %889 = vmatpush2.bf16.msra.mxu0 0
    %890 = vmatprep.mubr.bf16.mxu0 0
    %891 = vmatmul.mubr.bf16.gmra.mxu0 %v853
    %v892 = vpop.f32.mrf.mxu0
    %v893 = vadd.f32 0.0, %v892
    %v894 = vpop.f32.mrf.mxu0
    %v895 = vpop.f32.mrf.mxu0
    %v896 = vadd.f32 0.0, %v895
    %v897 = vpop.f32.mrf.mxu0
    %898 = vmatprep.mubr.bf16.mxu0 0
    %899 = vmatmul.mubr.bf16.gmra.mxu0 %v856
    %v900 = vpop.f32.mrf.mxu0
    %v901 = vadd.f32 0.0, %v900
    %v902 = vpop.f32.mrf.mxu0
    %v903 = vpop.f32.mrf.mxu0
    %v904 = vadd.f32 0.0, %v903
    %v905 = vpop.f32.mrf.mxu0
    %906 = vdwg.mxu0
    %v907 = vpack.c.bf16 %v896, %v893
    %v908 = vpack.c.bf16 %v904, %v901
    %s909 = scalar_lea.vmem %s3, 4
    %v910 = vld [vmem:[%s909] sm:$0xf]
    %v912 = vsel %vm349, %v907, 0
    %v915 = vsel %vm349, %v908, 0
    %vm917 = vcmask 1043456
    %v919 = vsel %vm917, %v910, 0
    %921 = vmatprep.subr.bf16.mxu0 0
    %922 = vmatpush1.bf16.msra.mxu0 0
    %923 = vmatprep.subr.bf16.mxu0 0
    %924 = vmatpush1.bf16.msra.mxu0 0
    %925 = vmatprep.subr.bf16.mxu0 0
    %926 = vmatpush1.bf16.msra.mxu0 0
    %927 = vmatprep.subr.bf16.mxu0 0
    %928 = vmatpush1.bf16.msra.mxu0 0
    %929 = vmatprep.subr.bf16.mxu0 0
    %930 = vmatpush1.bf16.msra.mxu0 0
    %931 = vmatprep.subr.bf16.mxu0 0
    %932 = vmatpush1.bf16.msra.mxu0 0
    %933 = vmatprep.subr.bf16.mxu0 0
    %934 = vmatpush1.bf16.msra.mxu0 0
    %935 = vmatprep.subr.bf16.mxu0 0
    %936 = vmatpush1.bf16.msra.mxu0 %v919
    %937 = vmatprep.subr.bf16.mxu0 0
    %938 = vmatpush2.bf16.msra.mxu0 0
    %939 = vmatprep.subr.bf16.mxu0 0
    %940 = vmatpush2.bf16.msra.mxu0 0
    %941 = vmatprep.subr.bf16.mxu0 0
    %942 = vmatpush2.bf16.msra.mxu0 0
    %943 = vmatprep.subr.bf16.mxu0 0
    %944 = vmatpush2.bf16.msra.mxu0 0
    %945 = vmatprep.subr.bf16.mxu0 0
    %946 = vmatpush2.bf16.msra.mxu0 0
    %947 = vmatprep.subr.bf16.mxu0 0
    %948 = vmatpush2.bf16.msra.mxu0 0
    %949 = vmatprep.subr.bf16.mxu0 0
    %950 = vmatpush2.bf16.msra.mxu0 0
    %951 = vmatprep.subr.bf16.mxu0 0
    %952 = vmatpush2.bf16.msra.mxu0 0
    %953 = vmatprep.mubr.bf16.mxu0 0
    %954 = vmatmul.mubr.bf16.gmra.mxu0 %v912
    %v955 = vpop.f32.mrf.mxu0
    %v956 = vadd.f32 0.0, %v955
    %v957 = vpop.f32.mrf.mxu0
    %v958 = vpop.f32.mrf.mxu0
    %v959 = vadd.f32 0.0, %v958
    %v960 = vpop.f32.mrf.mxu0
    %961 = vmatprep.mubr.bf16.mxu0 0
    %962 = vmatmul.mubr.bf16.gmra.mxu0 %v915
    %v963 = vpop.f32.mrf.mxu0
    %v964 = vadd.f32 0.0, %v963
    %v965 = vpop.f32.mrf.mxu0
    %v966 = vpop.f32.mrf.mxu0
    %v967 = vadd.f32 0.0, %v966
    %v968 = vpop.f32.mrf.mxu0
    %969 = vdwg.mxu0
    %v971 = vsel %vm349, %v514, 0
    %v974 = vsel %vm349, %v515, 0
    %v977 = vsel %vm917, %v516, 0
    %979 = vmatprep.subr.bf16.mxu0 0
    %980 = vmatpush1.bf16.msra.mxu0 0
    %981 = vmatprep.subr.bf16.mxu0 0
    %982 = vmatpush1.bf16.msra.mxu0 0
    %983 = vmatprep.subr.bf16.mxu0 0
    %984 = vmatpush1.bf16.msra.mxu0 0
    %985 = vmatprep.subr.bf16.mxu0 0
    %986 = vmatpush1.bf16.msra.mxu0 0
    %987 = vmatprep.subr.bf16.mxu0 0
    %988 = vmatpush1.bf16.msra.mxu0 0
    %989 = vmatprep.subr.bf16.mxu0 0
    %990 = vmatpush1.bf16.msra.mxu0 0
    %991 = vmatprep.subr.bf16.mxu0 0
    %992 = vmatpush1.bf16.msra.mxu0 0
    %993 = vmatprep.subr.bf16.mxu0 0
    %994 = vmatpush1.bf16.msra.mxu0 %v977
    %995 = vmatprep.subr.bf16.mxu0 0
    %996 = vmatpush2.bf16.msra.mxu0 0
    %997 = vmatprep.subr.bf16.mxu0 0
    %998 = vmatpush2.bf16.msra.mxu0 0
    %999 = vmatprep.subr.bf16.mxu0 0
    %1000 = vmatpush2.bf16.msra.mxu0 0
    %1001 = vmatprep.subr.bf16.mxu0 0
    %1002 = vmatpush2.bf16.msra.mxu0 0
    %1003 = vmatprep.subr.bf16.mxu0 0
    %1004 = vmatpush2.bf16.msra.mxu0 0
    %1005 = vmatprep.subr.bf16.mxu0 0
    %1006 = vmatpush2.bf16.msra.mxu0 0
    %1007 = vmatprep.subr.bf16.mxu0 0
    %1008 = vmatpush2.bf16.msra.mxu0 0
    %1009 = vmatprep.subr.bf16.mxu0 0
    %1010 = vmatpush2.bf16.msra.mxu0 0
    %1011 = vmatprep.mubr.bf16.mxu0 0
    %1012 = vmatmul.mubr.bf16.gmra.mxu0 %v971
    %v1013 = vpop.f32.mrf.mxu0
    %v1014 = vadd.f32 %v956, %v1013
    %v1015 = vpop.f32.mrf.mxu0
    %v1016 = vpop.f32.mrf.mxu0
    %v1017 = vadd.f32 %v959, %v1016
    %v1018 = vpop.f32.mrf.mxu0
    %1019 = vmatprep.mubr.bf16.mxu0 0
    %1020 = vmatmul.mubr.bf16.gmra.mxu0 %v974
    %v1021 = vpop.f32.mrf.mxu0
    %v1022 = vadd.f32 %v964, %v1021
    %v1023 = vpop.f32.mrf.mxu0
    %v1024 = vpop.f32.mrf.mxu0
    %v1025 = vadd.f32 %v967, %v1024
    %v1026 = vpop.f32.mrf.mxu0
    %1027 = vdwg.mxu0
    %s1028 = scalar_lea.vmem %s1, 32
    %v1029 = vld [vmem:[%s1028] sm:$0xf]
    %v1030 = vld [vmem:[%s1028 + $0x4] sm:$0xf]
    %v1031 = vld [vmem:[%s1028 + $0x8] sm:$0xf]
    %v1032 = vld [vmem:[%s1028 + $0xc] sm:$0xf]
    %s1033 = scalar_lea.vmem %s2, 2
    %v1034 = vld [vmem:[%s1033] sm:$0x1]
    %v1036 = vlaneseq
    %v1037 = vshrl.u32 %v1036, 7
    %v1038 = vsub.s32 0, %v1037
    %v1039 = vrot.slane %v1034, %v1038
    %v1045 = vunpack.c.l.b16 %v1029
    %v1046 = vunpack.c.l.b16 %v1030
    %v1047 = vunpack.c.l.b16 %v1031
    %v1048 = vunpack.c.l.b16 %v1032
    %v1049 = vpack.c.b16 %v1046, %v1045
    %v1050 = vpack.c.b16 %v1048, %v1047
    %1053 = vmatprep.subr.bf16.mxu0 0
    %1054 = vmatpush1.bf16.msra.mxu0 0
    %1055 = vmatprep.subr.bf16.mxu0 0
    %1056 = vmatpush1.bf16.msra.mxu0 0
    %1057 = vmatprep.subr.bf16.mxu0 0
    %1058 = vmatpush1.bf16.msra.mxu0 0
    %1059 = vmatprep.subr.bf16.mxu0 0
    %1060 = vmatpush1.bf16.msra.mxu0 0
    %1061 = vmatprep.subr.bf16.mxu0 0
    %1062 = vmatpush1.bf16.msra.mxu0 0
    %1063 = vmatprep.subr.bf16.mxu0 0
    %1064 = vmatpush1.bf16.msra.mxu0 0
    %1065 = vmatprep.subr.bf16.mxu0 0
    %1066 = vmatpush1.bf16.msra.mxu0 %v1050
    %1067 = vmatprep.subr.bf16.mxu0 0
    %1068 = vmatpush1.bf16.msra.mxu0 %v1049
    %1069 = vmatprep.subr.bf16.mxu0 0
    %1070 = vmatpush2.bf16.msra.mxu0 0
    %1071 = vmatprep.subr.bf16.mxu0 0
    %1072 = vmatpush2.bf16.msra.mxu0 0
    %1073 = vmatprep.subr.bf16.mxu0 0
    %1074 = vmatpush2.bf16.msra.mxu0 0
    %1075 = vmatprep.subr.bf16.mxu0 0
    %1076 = vmatpush2.bf16.msra.mxu0 0
    %1077 = vmatprep.subr.bf16.mxu0 0
    %1078 = vmatpush2.bf16.msra.mxu0 0
    %1079 = vmatprep.subr.bf16.mxu0 0
    %1080 = vmatpush2.bf16.msra.mxu0 0
    %1081 = vmatprep.subr.bf16.mxu0 0
    %1082 = vmatpush2.bf16.msra.mxu0 0
    %1083 = vmatprep.subr.bf16.mxu0 0
    %1084 = vmatpush2.bf16.msra.mxu0 0
    %1085 = vmatprep.mubr.bf16.mxu0 0
    %1086 = vmatmul.mubr.bf16.gmra.mxu0 %v143
    %v1087 = vpop.f32.mrf.mxu0
    %v1088 = vadd.f32 %v1039, %v1087
    %v1089 = vpop.f32.mrf.mxu0
    %v1090 = vpop.f32.mrf.mxu0
    %v1091 = vadd.f32 %v1039, %v1090
    %v1092 = vpop.f32.mrf.mxu0
    %1093 = vmatprep.mubr.bf16.mxu0 0
    %1094 = vmatmul.mubr.bf16.gmra.mxu0 %v146
    %v1095 = vpop.f32.mrf.mxu0
    %v1096 = vadd.f32 %v1039, %v1095
    %v1097 = vpop.f32.mrf.mxu0
    %v1098 = vpop.f32.mrf.mxu0
    %v1099 = vadd.f32 %v1039, %v1098
    %v1100 = vpop.f32.mrf.mxu0
    %1101 = vdwg.mxu0
    %s1102 = scalar_lea.vmem %s1, 96
    %v1103 = vld [vmem:[%s1102] sm:$0xf]
    %v1104 = vld [vmem:[%s1102 + $0x4] sm:$0xf]
    %v1105 = vld [vmem:[%s1102 + $0x8] sm:$0xf]
    %v1106 = vld [vmem:[%s1102 + $0xc] sm:$0xf]
    %s1107 = scalar_lea.vmem %s2, 6
    %v1108 = vld [vmem:[%s1107] sm:$0x1]
    %v1110 = vlaneseq
    %v1111 = vshrl.u32 %v1110, 7
    %v1112 = vsub.s32 0, %v1111
    %v1113 = vrot.slane %v1108, %v1112
    %v1119 = vunpack.c.l.b16 %v1103
    %v1120 = vunpack.c.l.b16 %v1104
    %v1121 = vunpack.c.l.b16 %v1105
    %v1122 = vunpack.c.l.b16 %v1106
    %v1123 = vpack.c.b16 %v1120, %v1119
    %v1124 = vpack.c.b16 %v1122, %v1121
    %1127 = vmatprep.subr.bf16.mxu0 0
    %1128 = vmatpush1.bf16.msra.mxu0 0
    %1129 = vmatprep.subr.bf16.mxu0 0
    %1130 = vmatpush1.bf16.msra.mxu0 0
    %1131 = vmatprep.subr.bf16.mxu0 0
    %1132 = vmatpush1.bf16.msra.mxu0 0
    %1133 = vmatprep.subr.bf16.mxu0 0
    %1134 = vmatpush1.bf16.msra.mxu0 0
    %1135 = vmatprep.subr.bf16.mxu0 0
    %1136 = vmatpush1.bf16.msra.mxu0 0
    %1137 = vmatprep.subr.bf16.mxu0 0
    %1138 = vmatpush1.bf16.msra.mxu0 0
    %1139 = vmatprep.subr.bf16.mxu0 0
    %1140 = vmatpush1.bf16.msra.mxu0 %v1124
    %1141 = vmatprep.subr.bf16.mxu0 0
    %1142 = vmatpush1.bf16.msra.mxu0 %v1123
    %1143 = vmatprep.subr.bf16.mxu0 0
    %1144 = vmatpush2.bf16.msra.mxu0 0
    %1145 = vmatprep.subr.bf16.mxu0 0
    %1146 = vmatpush2.bf16.msra.mxu0 0
    %1147 = vmatprep.subr.bf16.mxu0 0
    %1148 = vmatpush2.bf16.msra.mxu0 0
    %1149 = vmatprep.subr.bf16.mxu0 0
    %1150 = vmatpush2.bf16.msra.mxu0 0
    %1151 = vmatprep.subr.bf16.mxu0 0
    %1152 = vmatpush2.bf16.msra.mxu0 0
    %1153 = vmatprep.subr.bf16.mxu0 0
    %1154 = vmatpush2.bf16.msra.mxu0 0
    %1155 = vmatprep.subr.bf16.mxu0 0
    %1156 = vmatpush2.bf16.msra.mxu0 0
    %1157 = vmatprep.subr.bf16.mxu0 0
    %1158 = vmatpush2.bf16.msra.mxu0 0
    %1159 = vmatprep.mubr.bf16.mxu0 0
    %1160 = vmatmul.mubr.bf16.gmra.mxu0 %v143
    %v1161 = vpop.f32.mrf.mxu0
    %v1162 = vadd.f32 %v1113, %v1161
    %v1163 = vpop.f32.mrf.mxu0
    %v1164 = vpop.f32.mrf.mxu0
    %v1165 = vadd.f32 %v1113, %v1164
    %v1166 = vpop.f32.mrf.mxu0
    %1167 = vmatprep.mubr.bf16.mxu0 0
    %1168 = vmatmul.mubr.bf16.gmra.mxu0 %v146
    %v1169 = vpop.f32.mrf.mxu0
    %v1170 = vadd.f32 %v1113, %v1169
    %v1171 = vpop.f32.mrf.mxu0
    %v1172 = vpop.f32.mrf.mxu0
    %v1173 = vadd.f32 %v1113, %v1172
    %v1174 = vpop.f32.mrf.mxu0
    %1175 = vdwg.mxu0
    %s1176 = scalar_lea.vmem %s1, 160
    %v1177 = vld [vmem:[%s1176] sm:$0xf]
    %v1178 = vld [vmem:[%s1176 + $0x4] sm:$0xf]
    %v1179 = vld [vmem:[%s1176 + $0x8] sm:$0xf]
    %v1180 = vld [vmem:[%s1176 + $0xc] sm:$0xf]
    %s1181 = scalar_lea.vmem %s2, 10
    %v1182 = vld [vmem:[%s1181] sm:$0x1]
    %v1184 = vlaneseq
    %v1185 = vshrl.u32 %v1184, 7
    %v1186 = vsub.s32 0, %v1185
    %v1187 = vrot.slane %v1182, %v1186
    %v1193 = vunpack.c.l.b16 %v1177
    %v1194 = vunpack.c.l.b16 %v1178
    %v1195 = vunpack.c.l.b16 %v1179
    %v1196 = vunpack.c.l.b16 %v1180
    %v1197 = vpack.c.b16 %v1194, %v1193
    %v1198 = vpack.c.b16 %v1196, %v1195
    %1201 = vmatprep.subr.bf16.mxu0 0
    %1202 = vmatpush1.bf16.msra.mxu0 0
    %1203 = vmatprep.subr.bf16.mxu0 0
    %1204 = vmatpush1.bf16.msra.mxu0 0
    %1205 = vmatprep.subr.bf16.mxu0 0
    %1206 = vmatpush1.bf16.msra.mxu0 0
    %1207 = vmatprep.subr.bf16.mxu0 0
    %1208 = vmatpush1.bf16.msra.mxu0 0
    %1209 = vmatprep.subr.bf16.mxu0 0
    %1210 = vmatpush1.bf16.msra.mxu0 0
    %1211 = vmatprep.subr.bf16.mxu0 0
    %1212 = vmatpush1.bf16.msra.mxu0 0
    %1213 = vmatprep.subr.bf16.mxu0 0
    %1214 = vmatpush1.bf16.msra.mxu0 %v1198
    %1215 = vmatprep.subr.bf16.mxu0 0
    %1216 = vmatpush1.bf16.msra.mxu0 %v1197
    %1217 = vmatprep.subr.bf16.mxu0 0
    %1218 = vmatpush2.bf16.msra.mxu0 0
    %1219 = vmatprep.subr.bf16.mxu0 0
    %1220 = vmatpush2.bf16.msra.mxu0 0
    %1221 = vmatprep.subr.bf16.mxu0 0
    %1222 = vmatpush2.bf16.msra.mxu0 0
    %1223 = vmatprep.subr.bf16.mxu0 0
    %1224 = vmatpush2.bf16.msra.mxu0 0
    %1225 = vmatprep.subr.bf16.mxu0 0
    %1226 = vmatpush2.bf16.msra.mxu0 0
    %1227 = vmatprep.subr.bf16.mxu0 0
    %1228 = vmatpush2.bf16.msra.mxu0 0
    %1229 = vmatprep.subr.bf16.mxu0 0
    %1230 = vmatpush2.bf16.msra.mxu0 0
    %1231 = vmatprep.subr.bf16.mxu0 0
    %1232 = vmatpush2.bf16.msra.mxu0 0
    %1233 = vmatprep.mubr.bf16.mxu0 0
    %1234 = vmatmul.mubr.bf16.gmra.mxu0 %v143
    %v1235 = vpop.f32.mrf.mxu0
    %v1236 = vadd.f32 %v1187, %v1235
    %v1237 = vpop.f32.mrf.mxu0
    %v1238 = vpop.f32.mrf.mxu0
    %v1239 = vadd.f32 %v1187, %v1238
    %v1240 = vpop.f32.mrf.mxu0
    %1241 = vmatprep.mubr.bf16.mxu0 0
    %1242 = vmatmul.mubr.bf16.gmra.mxu0 %v146
    %v1243 = vpop.f32.mrf.mxu0
    %v1244 = vadd.f32 %v1187, %v1243
    %v1245 = vpop.f32.mrf.mxu0
    %v1246 = vpop.f32.mrf.mxu0
    %v1247 = vadd.f32 %v1187, %v1246
    %v1248 = vpop.f32.mrf.mxu0
    %1249 = vdwg.mxu0
    %v1250 = vpack.c.bf16 %v1091, %v1088
    %v1251 = vpack.c.bf16 %v1099, %v1096
    %v1252 = vpack.c.bf16 %v1165, %v1162
    %v1253 = vpack.c.bf16 %v1173, %v1170
    %v1255 = vsel %vm349, %v1250, 0
    %v1258 = vsel %vm349, %v1251, 0
    %v1261 = vsel %vm349, %v1252, 0
    %v1264 = vsel %vm349, %v1253, 0
    %1266 = vmatprep.subr.bf16.mxu0 0
    %1267 = vmatpush1.bf16.xpose.msra.mxu0 0
    %1268 = vmatprep.subr.bf16.mxu0 0
    %1269 = vmatpush1.bf16.xpose.msra.mxu0 0
    %1270 = vmatprep.subr.bf16.mxu0 0
    %1271 = vmatpush1.bf16.xpose.msra.mxu0 0
    %1272 = vmatprep.subr.bf16.mxu0 0
    %1273 = vmatpush1.bf16.xpose.msra.mxu0 0
    %1274 = vmatprep.subr.bf16.mxu0 0
    %1275 = vmatpush1.bf16.xpose.msra.mxu0 0
    %1276 = vmatprep.subr.bf16.mxu0 0
    %1277 = vmatpush1.bf16.xpose.msra.mxu0 0
    %1278 = vmatprep.subr.bf16.mxu0 0
    %1279 = vmatpush1.bf16.xpose.msra.mxu0 %v1264
    %1280 = vmatprep.subr.bf16.mxu0 0
    %1281 = vmatpush1.bf16.xpose.msra.mxu0 %v1261
    %1282 = vmatprep.subr.bf16.mxu0 0
    %1283 = vmatpush2.bf16.xpose.msra.mxu0 0
    %1284 = vmatprep.subr.bf16.mxu0 0
    %1285 = vmatpush2.bf16.xpose.msra.mxu0 0
    %1286 = vmatprep.subr.bf16.mxu0 0
    %1287 = vmatpush2.bf16.xpose.msra.mxu0 0
    %1288 = vmatprep.subr.bf16.mxu0 0
    %1289 = vmatpush2.bf16.xpose.msra.mxu0 0
    %1290 = vmatprep.subr.bf16.mxu0 0
    %1291 = vmatpush2.bf16.xpose.msra.mxu0 0
    %1292 = vmatprep.subr.bf16.mxu0 0
    %1293 = vmatpush2.bf16.xpose.msra.mxu0 0
    %1294 = vmatprep.subr.bf16.mxu0 0
    %1295 = vmatpush2.bf16.xpose.msra.mxu0 0
    %1296 = vmatprep.subr.bf16.mxu0 0
    %1297 = vmatpush2.bf16.xpose.msra.mxu0 0
    %1298 = vmatprep.mubr.bf16.mxu0 0
    %1299 = vmatmul.mubr.bf16.gmra.mxu0 %v1255
    %v1300 = vpop.f32.mrf.mxu0
    %v1301 = vadd.f32 %v51, %v1300
    %v1302 = vpop.f32.mrf.mxu0
    %v1303 = vpop.f32.mrf.mxu0
    %v1304 = vadd.f32 %v52, %v1303
    %v1305 = vpop.f32.mrf.mxu0
    %1306 = vmatprep.mubr.bf16.mxu0 0
    %1307 = vmatmul.mubr.bf16.gmra.mxu0 %v1258
    %v1308 = vpop.f32.mrf.mxu0
    %v1309 = vadd.f32 %v53, %v1308
    %v1310 = vpop.f32.mrf.mxu0
    %v1311 = vpop.f32.mrf.mxu0
    %v1312 = vadd.f32 %v54, %v1311
    %v1313 = vpop.f32.mrf.mxu0
    %1314 = vdwg.mxu0
    %v1315 = vsel %vm55, %v1301, -inf
    %1316 = vmax.xlane.f32.xlu0 %v1315
    %v1317 = vpop.xlane.xlu0 %1316
    %v1318 = vsel %vm55, %v1304, -inf
    %1319 = vmax.xlane.f32.xlu0 %v1318
    %v1320 = vpop.xlane.xlu0 %1319
    %v1321 = vsel %vm55, %v1309, -inf
    %1322 = vmax.xlane.f32.xlu0 %v1321
    %v1323 = vpop.xlane.xlu0 %1322
    %v1324 = vsel %vm55, %v1312, -inf
    %1325 = vmax.xlane.f32.xlu0 %v1324
    %v1326 = vpop.xlane.xlu0 %1325
    %v1327 = vsub.f32 %v1301, %v1317
    %v1328 = vsub.f32 %v1304, %v1320
    %v1329 = vsub.f32 %v1309, %v1323
    %v1330 = vsub.f32 %v1312, %v1326
    %v1331 = vmul.f32 %v1327, 1.442695
    %v1332 = vpow.pop %v1331
    %v1333 = vmul.f32 %v1328, 1.442695
    %v1334 = vpow.pop %v1333
    %v1335 = vmul.f32 %v1329, 1.442695
    %v1336 = vpow.pop %v1335
    %v1337 = vmul.f32 %v1330, 1.442695
    %v1338 = vpow.pop %v1337
    %v1339 = vsel %vm55, %v1332, 0.0
    %1340 = vadd.xlane.f32.xlu0 %v1339
    %v1341 = vpop.xlane.xlu0 %1340
    %v1342 = vsel %vm55, %v1334, 0.0
    %1343 = vadd.xlane.f32.xlu0 %v1342
    %v1344 = vpop.xlane.xlu0 %1343
    %v1345 = vsel %vm55, %v1336, 0.0
    %1346 = vadd.xlane.f32.xlu0 %v1345
    %v1347 = vpop.xlane.xlu0 %1346
    %v1348 = vsel %vm55, %v1338, 0.0
    %1349 = vadd.xlane.f32.xlu0 %v1348
    %v1350 = vpop.xlane.xlu0 %1349
    %v1351 = vrcp.pop %v1341
    %v1352 = vrcp.pop %v1344
    %v1353 = vrcp.pop %v1347
    %v1354 = vrcp.pop %v1350
    %v1355 = vmul.f32 %v1332, %v1351
    %v1356 = vmul.f32 %v1334, %v1352
    %v1357 = vmul.f32 %v1336, %v1353
    %v1358 = vmul.f32 %v1338, %v1354
    %v1359 = vpack.c.bf16 %v1356, %v1355
    %v1360 = vpack.c.bf16 %v1358, %v1357
    %v1361 = vpack.c.bf16 %v1239, %v1236
    %v1362 = vpack.c.bf16 %v1247, %v1244
    %v1364 = vsel %vm55, %v1359, 0
    %v1367 = vsel %vm55, %v1360, 0
    %1369 = vmatprep.subr.bf16.mxu0 0
    %1370 = vmatpush1.bf16.msra.mxu0 0
    %1371 = vmatprep.subr.bf16.mxu0 0
    %1372 = vmatpush1.bf16.msra.mxu0 0
    %1373 = vmatprep.subr.bf16.mxu0 0
    %1374 = vmatpush1.bf16.msra.mxu0 0
    %1375 = vmatprep.subr.bf16.mxu0 0
    %1376 = vmatpush1.bf16.msra.mxu0 0
    %1377 = vmatprep.subr.bf16.mxu0 0
    %1378 = vmatpush1.bf16.msra.mxu0 0
    %1379 = vmatprep.subr.bf16.mxu0 0
    %1380 = vmatpush1.bf16.msra.mxu0 0
    %1381 = vmatprep.subr.bf16.mxu0 0
    %1382 = vmatpush1.bf16.msra.mxu0 %v1362
    %1383 = vmatprep.subr.bf16.mxu0 0
    %1384 = vmatpush1.bf16.msra.mxu0 %v1361
    %1385 = vmatprep.subr.bf16.mxu0 0
    %1386 = vmatpush2.bf16.msra.mxu0 0
    %1387 = vmatprep.subr.bf16.mxu0 0
    %1388 = vmatpush2.bf16.msra.mxu0 0
    %1389 = vmatprep.subr.bf16.mxu0 0
    %1390 = vmatpush2.bf16.msra.mxu0 0
    %1391 = vmatprep.subr.bf16.mxu0 0
    %1392 = vmatpush2.bf16.msra.mxu0 0
    %1393 = vmatprep.subr.bf16.mxu0 0
    %1394 = vmatpush2.bf16.msra.mxu0 0
    %1395 = vmatprep.subr.bf16.mxu0 0
    %1396 = vmatpush2.bf16.msra.mxu0 0
    %1397 = vmatprep.subr.bf16.mxu0 0
    %1398 = vmatpush2.bf16.msra.mxu0 0
    %1399 = vmatprep.subr.bf16.mxu0 0
    %1400 = vmatpush2.bf16.msra.mxu0 0
    %1401 = vmatprep.mubr.bf16.mxu0 0
    %1402 = vmatmul.mubr.bf16.gmra.mxu0 %v1364
    %v1403 = vpop.f32.mrf.mxu0
    %v1404 = vadd.f32 0.0, %v1403
    %v1405 = vpop.f32.mrf.mxu0
    %v1406 = vpop.f32.mrf.mxu0
    %v1407 = vadd.f32 0.0, %v1406
    %v1408 = vpop.f32.mrf.mxu0
    %1409 = vmatprep.mubr.bf16.mxu0 0
    %1410 = vmatmul.mubr.bf16.gmra.mxu0 %v1367
    %v1411 = vpop.f32.mrf.mxu0
    %v1412 = vadd.f32 0.0, %v1411
    %v1413 = vpop.f32.mrf.mxu0
    %v1414 = vpop.f32.mrf.mxu0
    %v1415 = vadd.f32 0.0, %v1414
    %v1416 = vpop.f32.mrf.mxu0
    %1417 = vdwg.mxu0
    %v1418 = vpack.c.bf16 %v1407, %v1404
    %v1419 = vpack.c.bf16 %v1415, %v1412
    %s1420 = scalar_lea.vmem %s3, 8
    %v1421 = vld [vmem:[%s1420] sm:$0xf]
    %v1423 = vsel %vm349, %v1418, 0
    %v1426 = vsel %vm349, %v1419, 0
    %v1429 = vsel %vm917, %v1421, 0
    %1431 = vmatprep.subr.bf16.mxu0 0
    %1432 = vmatpush1.bf16.msra.mxu0 0
    %1433 = vmatprep.subr.bf16.mxu0 0
    %1434 = vmatpush1.bf16.msra.mxu0 0
    %1435 = vmatprep.subr.bf16.mxu0 0
    %1436 = vmatpush1.bf16.msra.mxu0 0
    %1437 = vmatprep.subr.bf16.mxu0 0
    %1438 = vmatpush1.bf16.msra.mxu0 0
    %1439 = vmatprep.subr.bf16.mxu0 0
    %1440 = vmatpush1.bf16.msra.mxu0 0
    %1441 = vmatprep.subr.bf16.mxu0 0
    %1442 = vmatpush1.bf16.msra.mxu0 0
    %1443 = vmatprep.subr.bf16.mxu0 0
    %1444 = vmatpush1.bf16.msra.mxu0 0
    %1445 = vmatprep.subr.bf16.mxu0 0
    %1446 = vmatpush1.bf16.msra.mxu0 %v1429
    %1447 = vmatprep.subr.bf16.mxu0 0
    %1448 = vmatpush2.bf16.msra.mxu0 0
    %1449 = vmatprep.subr.bf16.mxu0 0
    %1450 = vmatpush2.bf16.msra.mxu0 0
    %1451 = vmatprep.subr.bf16.mxu0 0
    %1452 = vmatpush2.bf16.msra.mxu0 0
    %1453 = vmatprep.subr.bf16.mxu0 0
    %1454 = vmatpush2.bf16.msra.mxu0 0
    %1455 = vmatprep.subr.bf16.mxu0 0
    %1456 = vmatpush2.bf16.msra.mxu0 0
    %1457 = vmatprep.subr.bf16.mxu0 0
    %1458 = vmatpush2.bf16.msra.mxu0 0
    %1459 = vmatprep.subr.bf16.mxu0 0
    %1460 = vmatpush2.bf16.msra.mxu0 0
    %1461 = vmatprep.subr.bf16.mxu0 0
    %1462 = vmatpush2.bf16.msra.mxu0 0
    %1463 = vmatprep.mubr.bf16.mxu0 0
    %1464 = vmatmul.mubr.bf16.gmra.mxu0 %v1423
    %v1465 = vpop.f32.mrf.mxu0
    %v1466 = vadd.f32 0.0, %v1465
    %v1467 = vpop.f32.mrf.mxu0
    %v1468 = vpop.f32.mrf.mxu0
    %v1469 = vadd.f32 0.0, %v1468
    %v1470 = vpop.f32.mrf.mxu0
    %1471 = vmatprep.mubr.bf16.mxu0 0
    %1472 = vmatmul.mubr.bf16.gmra.mxu0 %v1426
    %v1473 = vpop.f32.mrf.mxu0
    %v1474 = vadd.f32 0.0, %v1473
    %v1475 = vpop.f32.mrf.mxu0
    %v1476 = vpop.f32.mrf.mxu0
    %v1477 = vadd.f32 0.0, %v1476
    %v1478 = vpop.f32.mrf.mxu0
    %1479 = vdwg.mxu0
    %v1480 = vadd.f32 %v1014, %v1466
    %v1481 = vadd.f32 %v1017, %v1469
    %v1482 = vadd.f32 %v1022, %v1474
    %v1483 = vadd.f32 %v1025, %v1477
    %s1484 = scalar_lea.vmem %s1, 48
    %v1485 = vld [vmem:[%s1484] sm:$0xf]
    %v1486 = vld [vmem:[%s1484 + $0x4] sm:$0xf]
    %v1487 = vld [vmem:[%s1484 + $0x8] sm:$0xf]
    %v1488 = vld [vmem:[%s1484 + $0xc] sm:$0xf]
    %s1489 = scalar_lea.vmem %s2, 3
    %v1490 = vld [vmem:[%s1489] sm:$0x1]
    %v1492 = vlaneseq
    %v1493 = vshrl.u32 %v1492, 7
    %v1494 = vsub.s32 0, %v1493
    %v1495 = vrot.slane %v1490, %v1494
    %v1501 = vunpack.c.l.b16 %v1485
    %v1502 = vunpack.c.l.b16 %v1486
    %v1503 = vunpack.c.l.b16 %v1487
    %v1504 = vunpack.c.l.b16 %v1488
    %v1505 = vpack.c.b16 %v1502, %v1501
    %v1506 = vpack.c.b16 %v1504, %v1503
    %1509 = vmatprep.subr.bf16.mxu0 0
    %1510 = vmatpush1.bf16.msra.mxu0 0
    %1511 = vmatprep.subr.bf16.mxu0 0
    %1512 = vmatpush1.bf16.msra.mxu0 0
    %1513 = vmatprep.subr.bf16.mxu0 0
    %1514 = vmatpush1.bf16.msra.mxu0 0
    %1515 = vmatprep.subr.bf16.mxu0 0
    %1516 = vmatpush1.bf16.msra.mxu0 0
    %1517 = vmatprep.subr.bf16.mxu0 0
    %1518 = vmatpush1.bf16.msra.mxu0 0
    %1519 = vmatprep.subr.bf16.mxu0 0
    %1520 = vmatpush1.bf16.msra.mxu0 0
    %1521 = vmatprep.subr.bf16.mxu0 0
    %1522 = vmatpush1.bf16.msra.mxu0 %v1506
    %1523 = vmatprep.subr.bf16.mxu0 0
    %1524 = vmatpush1.bf16.msra.mxu0 %v1505
    %1525 = vmatprep.subr.bf16.mxu0 0
    %1526 = vmatpush2.bf16.msra.mxu0 0
    %1527 = vmatprep.subr.bf16.mxu0 0
    %1528 = vmatpush2.bf16.msra.mxu0 0
    %1529 = vmatprep.subr.bf16.mxu0 0
    %1530 = vmatpush2.bf16.msra.mxu0 0
    %1531 = vmatprep.subr.bf16.mxu0 0
    %1532 = vmatpush2.bf16.msra.mxu0 0
    %1533 = vmatprep.subr.bf16.mxu0 0
    %1534 = vmatpush2.bf16.msra.mxu0 0
    %1535 = vmatprep.subr.bf16.mxu0 0
    %1536 = vmatpush2.bf16.msra.mxu0 0
    %1537 = vmatprep.subr.bf16.mxu0 0
    %1538 = vmatpush2.bf16.msra.mxu0 0
    %1539 = vmatprep.subr.bf16.mxu0 0
    %1540 = vmatpush2.bf16.msra.mxu0 0
    %1541 = vmatprep.mubr.bf16.mxu0 0
    %1542 = vmatmul.mubr.bf16.gmra.mxu0 %v143
    %v1543 = vpop.f32.mrf.mxu0
    %v1544 = vadd.f32 %v1495, %v1543
    %v1545 = vpop.f32.mrf.mxu0
    %v1546 = vpop.f32.mrf.mxu0
    %v1547 = vadd.f32 %v1495, %v1546
    %v1548 = vpop.f32.mrf.mxu0
    %1549 = vmatprep.mubr.bf16.mxu0 0
    %1550 = vmatmul.mubr.bf16.gmra.mxu0 %v146
    %v1551 = vpop.f32.mrf.mxu0
    %v1552 = vadd.f32 %v1495, %v1551
    %v1553 = vpop.f32.mrf.mxu0
    %v1554 = vpop.f32.mrf.mxu0
    %v1555 = vadd.f32 %v1495, %v1554
    %v1556 = vpop.f32.mrf.mxu0
    %1557 = vdwg.mxu0
    %s1558 = scalar_lea.vmem %s1, 112
    %v1559 = vld [vmem:[%s1558] sm:$0xf]
    %v1560 = vld [vmem:[%s1558 + $0x4] sm:$0xf]
    %v1561 = vld [vmem:[%s1558 + $0x8] sm:$0xf]
    %v1562 = vld [vmem:[%s1558 + $0xc] sm:$0xf]
    %s1563 = scalar_lea.vmem %s2, 7
    %v1564 = vld [vmem:[%s1563] sm:$0x1]
    %v1566 = vlaneseq
    %v1567 = vshrl.u32 %v1566, 7
    %v1568 = vsub.s32 0, %v1567
    %v1569 = vrot.slane %v1564, %v1568
    %v1575 = vunpack.c.l.b16 %v1559
    %v1576 = vunpack.c.l.b16 %v1560
    %v1577 = vunpack.c.l.b16 %v1561
    %v1578 = vunpack.c.l.b16 %v1562
    %v1579 = vpack.c.b16 %v1576, %v1575
    %v1580 = vpack.c.b16 %v1578, %v1577
    %1583 = vmatprep.subr.bf16.mxu0 0
    %1584 = vmatpush1.bf16.msra.mxu0 0
    %1585 = vmatprep.subr.bf16.mxu0 0
    %1586 = vmatpush1.bf16.msra.mxu0 0
    %1587 = vmatprep.subr.bf16.mxu0 0
    %1588 = vmatpush1.bf16.msra.mxu0 0
    %1589 = vmatprep.subr.bf16.mxu0 0
    %1590 = vmatpush1.bf16.msra.mxu0 0
    %1591 = vmatprep.subr.bf16.mxu0 0
    %1592 = vmatpush1.bf16.msra.mxu0 0
    %1593 = vmatprep.subr.bf16.mxu0 0
    %1594 = vmatpush1.bf16.msra.mxu0 0
    %1595 = vmatprep.subr.bf16.mxu0 0
    %1596 = vmatpush1.bf16.msra.mxu0 %v1580
    %1597 = vmatprep.subr.bf16.mxu0 0
    %1598 = vmatpush1.bf16.msra.mxu0 %v1579
    %1599 = vmatprep.subr.bf16.mxu0 0
    %1600 = vmatpush2.bf16.msra.mxu0 0
    %1601 = vmatprep.subr.bf16.mxu0 0
    %1602 = vmatpush2.bf16.msra.mxu0 0
    %1603 = vmatprep.subr.bf16.mxu0 0
    %1604 = vmatpush2.bf16.msra.mxu0 0
    %1605 = vmatprep.subr.bf16.mxu0 0
    %1606 = vmatpush2.bf16.msra.mxu0 0
    %1607 = vmatprep.subr.bf16.mxu0 0
    %1608 = vmatpush2.bf16.msra.mxu0 0
    %1609 = vmatprep.subr.bf16.mxu0 0
    %1610 = vmatpush2.bf16.msra.mxu0 0
    %1611 = vmatprep.subr.bf16.mxu0 0
    %1612 = vmatpush2.bf16.msra.mxu0 0
    %1613 = vmatprep.subr.bf16.mxu0 0
    %1614 = vmatpush2.bf16.msra.mxu0 0
    %1615 = vmatprep.mubr.bf16.mxu0 0
    %1616 = vmatmul.mubr.bf16.gmra.mxu0 %v143
    %v1617 = vpop.f32.mrf.mxu0
    %v1618 = vadd.f32 %v1569, %v1617
    %v1619 = vpop.f32.mrf.mxu0
    %v1620 = vpop.f32.mrf.mxu0
    %v1621 = vadd.f32 %v1569, %v1620
    %v1622 = vpop.f32.mrf.mxu0
    %1623 = vmatprep.mubr.bf16.mxu0 0
    %1624 = vmatmul.mubr.bf16.gmra.mxu0 %v146
    %v1625 = vpop.f32.mrf.mxu0
    %v1626 = vadd.f32 %v1569, %v1625
    %v1627 = vpop.f32.mrf.mxu0
    %v1628 = vpop.f32.mrf.mxu0
    %v1629 = vadd.f32 %v1569, %v1628
    %v1630 = vpop.f32.mrf.mxu0
    %1631 = vdwg.mxu0
    %s1632 = scalar_lea.vmem %s1, 176
    %v1633 = vld [vmem:[%s1632] sm:$0xf]
    %v1634 = vld [vmem:[%s1632 + $0x4] sm:$0xf]
    %v1635 = vld [vmem:[%s1632 + $0x8] sm:$0xf]
    %v1636 = vld [vmem:[%s1632 + $0xc] sm:$0xf]
    %s1637 = scalar_lea.vmem %s2, 11
    %v1638 = vld [vmem:[%s1637] sm:$0x1]
    %v1640 = vlaneseq
    %v1641 = vshrl.u32 %v1640, 7
    %v1642 = vsub.s32 0, %v1641
    %v1643 = vrot.slane %v1638, %v1642
    %v1649 = vunpack.c.l.b16 %v1633
    %v1650 = vunpack.c.l.b16 %v1634
    %v1651 = vunpack.c.l.b16 %v1635
    %v1652 = vunpack.c.l.b16 %v1636
    %v1653 = vpack.c.b16 %v1650, %v1649
    %v1654 = vpack.c.b16 %v1652, %v1651
    %1657 = vmatprep.subr.bf16.mxu0 0
    %1658 = vmatpush1.bf16.msra.mxu0 0
    %1659 = vmatprep.subr.bf16.mxu0 0
    %1660 = vmatpush1.bf16.msra.mxu0 0
    %1661 = vmatprep.subr.bf16.mxu0 0
    %1662 = vmatpush1.bf16.msra.mxu0 0
    %1663 = vmatprep.subr.bf16.mxu0 0
    %1664 = vmatpush1.bf16.msra.mxu0 0
    %1665 = vmatprep.subr.bf16.mxu0 0
    %1666 = vmatpush1.bf16.msra.mxu0 0
    %1667 = vmatprep.subr.bf16.mxu0 0
    %1668 = vmatpush1.bf16.msra.mxu0 0
    %1669 = vmatprep.subr.bf16.mxu0 0
    %1670 = vmatpush1.bf16.msra.mxu0 %v1654
    %1671 = vmatprep.subr.bf16.mxu0 0
    %1672 = vmatpush1.bf16.msra.mxu0 %v1653
    %1673 = vmatprep.subr.bf16.mxu0 0
    %1674 = vmatpush2.bf16.msra.mxu0 0
    %1675 = vmatprep.subr.bf16.mxu0 0
    %1676 = vmatpush2.bf16.msra.mxu0 0
    %1677 = vmatprep.subr.bf16.mxu0 0
    %1678 = vmatpush2.bf16.msra.mxu0 0
    %1679 = vmatprep.subr.bf16.mxu0 0
    %1680 = vmatpush2.bf16.msra.mxu0 0
    %1681 = vmatprep.subr.bf16.mxu0 0
    %1682 = vmatpush2.bf16.msra.mxu0 0
    %1683 = vmatprep.subr.bf16.mxu0 0
    %1684 = vmatpush2.bf16.msra.mxu0 0
    %1685 = vmatprep.subr.bf16.mxu0 0
    %1686 = vmatpush2.bf16.msra.mxu0 0
    %1687 = vmatprep.subr.bf16.mxu0 0
    %1688 = vmatpush2.bf16.msra.mxu0 0
    %1689 = vmatprep.mubr.bf16.mxu0 0
    %1690 = vmatmul.mubr.bf16.gmra.mxu0 %v143
    %v1691 = vpop.f32.mrf.mxu0
    %v1692 = vadd.f32 %v1643, %v1691
    %v1693 = vpop.f32.mrf.mxu0
    %v1694 = vpop.f32.mrf.mxu0
    %v1695 = vadd.f32 %v1643, %v1694
    %v1696 = vpop.f32.mrf.mxu0
    %1697 = vmatprep.mubr.bf16.mxu0 0
    %1698 = vmatmul.mubr.bf16.gmra.mxu0 %v146
    %v1699 = vpop.f32.mrf.mxu0
    %v1700 = vadd.f32 %v1643, %v1699
    %v1701 = vpop.f32.mrf.mxu0
    %v1702 = vpop.f32.mrf.mxu0
    %v1703 = vadd.f32 %v1643, %v1702
    %v1704 = vpop.f32.mrf.mxu0
    %1705 = vdwg.mxu0
    %v1706 = vpack.c.bf16 %v1547, %v1544
    %v1707 = vpack.c.bf16 %v1555, %v1552
    %v1708 = vpack.c.bf16 %v1621, %v1618
    %v1709 = vpack.c.bf16 %v1629, %v1626
    %v1711 = vsel %vm349, %v1706, 0
    %v1714 = vsel %vm349, %v1707, 0
    %v1717 = vsel %vm349, %v1708, 0
    %v1720 = vsel %vm349, %v1709, 0
    %1722 = vmatprep.subr.bf16.mxu0 0
    %1723 = vmatpush1.bf16.xpose.msra.mxu0 0
    %1724 = vmatprep.subr.bf16.mxu0 0
    %1725 = vmatpush1.bf16.xpose.msra.mxu0 0
    %1726 = vmatprep.subr.bf16.mxu0 0
    %1727 = vmatpush1.bf16.xpose.msra.mxu0 0
    %1728 = vmatprep.subr.bf16.mxu0 0
    %1729 = vmatpush1.bf16.xpose.msra.mxu0 0
    %1730 = vmatprep.subr.bf16.mxu0 0
    %1731 = vmatpush1.bf16.xpose.msra.mxu0 0
    %1732 = vmatprep.subr.bf16.mxu0 0
    %1733 = vmatpush1.bf16.xpose.msra.mxu0 0
    %1734 = vmatprep.subr.bf16.mxu0 0
    %1735 = vmatpush1.bf16.xpose.msra.mxu0 %v1720
    %1736 = vmatprep.subr.bf16.mxu0 0
    %1737 = vmatpush1.bf16.xpose.msra.mxu0 %v1717
    %1738 = vmatprep.subr.bf16.mxu0 0
    %1739 = vmatpush2.bf16.xpose.msra.mxu0 0
    %1740 = vmatprep.subr.bf16.mxu0 0
    %1741 = vmatpush2.bf16.xpose.msra.mxu0 0
    %1742 = vmatprep.subr.bf16.mxu0 0
    %1743 = vmatpush2.bf16.xpose.msra.mxu0 0
    %1744 = vmatprep.subr.bf16.mxu0 0
    %1745 = vmatpush2.bf16.xpose.msra.mxu0 0
    %1746 = vmatprep.subr.bf16.mxu0 0
    %1747 = vmatpush2.bf16.xpose.msra.mxu0 0
    %1748 = vmatprep.subr.bf16.mxu0 0
    %1749 = vmatpush2.bf16.xpose.msra.mxu0 0
    %1750 = vmatprep.subr.bf16.mxu0 0
    %1751 = vmatpush2.bf16.xpose.msra.mxu0 0
    %1752 = vmatprep.subr.bf16.mxu0 0
    %1753 = vmatpush2.bf16.xpose.msra.mxu0 0
    %1754 = vmatprep.mubr.bf16.mxu0 0
    %1755 = vmatmul.mubr.bf16.gmra.mxu0 %v1711
    %v1756 = vpop.f32.mrf.mxu0
    %v1757 = vadd.f32 %v51, %v1756
    %v1758 = vpop.f32.mrf.mxu0
    %v1759 = vpop.f32.mrf.mxu0
    %v1760 = vadd.f32 %v52, %v1759
    %v1761 = vpop.f32.mrf.mxu0
    %1762 = vmatprep.mubr.bf16.mxu0 0
    %1763 = vmatmul.mubr.bf16.gmra.mxu0 %v1714
    %v1764 = vpop.f32.mrf.mxu0
    %v1765 = vadd.f32 %v53, %v1764
    %v1766 = vpop.f32.mrf.mxu0
    %v1767 = vpop.f32.mrf.mxu0
    %v1768 = vadd.f32 %v54, %v1767
    %v1769 = vpop.f32.mrf.mxu0
    %1770 = vdwg.mxu0
    %v1771 = vsel %vm55, %v1757, -inf
    %1772 = vmax.xlane.f32.xlu0 %v1771
    %v1773 = vpop.xlane.xlu0 %1772
    %v1774 = vsel %vm55, %v1760, -inf
    %1775 = vmax.xlane.f32.xlu0 %v1774
    %v1776 = vpop.xlane.xlu0 %1775
    %v1777 = vsel %vm55, %v1765, -inf
    %1778 = vmax.xlane.f32.xlu0 %v1777
    %v1779 = vpop.xlane.xlu0 %1778
    %v1780 = vsel %vm55, %v1768, -inf
    %1781 = vmax.xlane.f32.xlu0 %v1780
    %v1782 = vpop.xlane.xlu0 %1781
    %v1783 = vsub.f32 %v1757, %v1773
    %v1784 = vsub.f32 %v1760, %v1776
    %v1785 = vsub.f32 %v1765, %v1779
    %v1786 = vsub.f32 %v1768, %v1782
    %v1787 = vmul.f32 %v1783, 1.442695
    %v1788 = vpow.pop %v1787
    %v1789 = vmul.f32 %v1784, 1.442695
    %v1790 = vpow.pop %v1789
    %v1791 = vmul.f32 %v1785, 1.442695
    %v1792 = vpow.pop %v1791
    %v1793 = vmul.f32 %v1786, 1.442695
    %v1794 = vpow.pop %v1793
    %v1795 = vsel %vm55, %v1788, 0.0
    %1796 = vadd.xlane.f32.xlu0 %v1795
    %v1797 = vpop.xlane.xlu0 %1796
    %v1798 = vsel %vm55, %v1790, 0.0
    %1799 = vadd.xlane.f32.xlu0 %v1798
    %v1800 = vpop.xlane.xlu0 %1799
    %v1801 = vsel %vm55, %v1792, 0.0
    %1802 = vadd.xlane.f32.xlu0 %v1801
    %v1803 = vpop.xlane.xlu0 %1802
    %v1804 = vsel %vm55, %v1794, 0.0
    %1805 = vadd.xlane.f32.xlu0 %v1804
    %v1806 = vpop.xlane.xlu0 %1805
    %v1807 = vrcp.pop %v1797
    %v1808 = vrcp.pop %v1800
    %v1809 = vrcp.pop %v1803
    %v1810 = vrcp.pop %v1806
    %v1811 = vmul.f32 %v1788, %v1807
    %v1812 = vmul.f32 %v1790, %v1808
    %v1813 = vmul.f32 %v1792, %v1809
    %v1814 = vmul.f32 %v1794, %v1810
    %v1815 = vpack.c.bf16 %v1812, %v1811
    %v1816 = vpack.c.bf16 %v1814, %v1813
    %v1817 = vpack.c.bf16 %v1695, %v1692
    %v1818 = vpack.c.bf16 %v1703, %v1700
    %v1820 = vsel %vm55, %v1815, 0
    %v1823 = vsel %vm55, %v1816, 0
    %1825 = vmatprep.subr.bf16.mxu0 0
    %1826 = vmatpush1.bf16.msra.mxu0 0
    %1827 = vmatprep.subr.bf16.mxu0 0
    %1828 = vmatpush1.bf16.msra.mxu0 0
    %1829 = vmatprep.subr.bf16.mxu0 0
    %1830 = vmatpush1.bf16.msra.mxu0 0
    %1831 = vmatprep.subr.bf16.mxu0 0
    %1832 = vmatpush1.bf16.msra.mxu0 0
    %1833 = vmatprep.subr.bf16.mxu0 0
    %1834 = vmatpush1.bf16.msra.mxu0 0
    %1835 = vmatprep.subr.bf16.mxu0 0
    %1836 = vmatpush1.bf16.msra.mxu0 0
    %1837 = vmatprep.subr.bf16.mxu0 0
    %1838 = vmatpush1.bf16.msra.mxu0 %v1818
    %1839 = vmatprep.subr.bf16.mxu0 0
    %1840 = vmatpush1.bf16.msra.mxu0 %v1817
    %1841 = vmatprep.subr.bf16.mxu0 0
    %1842 = vmatpush2.bf16.msra.mxu0 0
    %1843 = vmatprep.subr.bf16.mxu0 0
    %1844 = vmatpush2.bf16.msra.mxu0 0
    %1845 = vmatprep.subr.bf16.mxu0 0
    %1846 = vmatpush2.bf16.msra.mxu0 0
    %1847 = vmatprep.subr.bf16.mxu0 0
    %1848 = vmatpush2.bf16.msra.mxu0 0
    %1849 = vmatprep.subr.bf16.mxu0 0
    %1850 = vmatpush2.bf16.msra.mxu0 0
    %1851 = vmatprep.subr.bf16.mxu0 0
    %1852 = vmatpush2.bf16.msra.mxu0 0
    %1853 = vmatprep.subr.bf16.mxu0 0
    %1854 = vmatpush2.bf16.msra.mxu0 0
    %1855 = vmatprep.subr.bf16.mxu0 0
    %1856 = vmatpush2.bf16.msra.mxu0 0
    %1857 = vmatprep.mubr.bf16.mxu0 0
    %1858 = vmatmul.mubr.bf16.gmra.mxu0 %v1820
    %v1859 = vpop.f32.mrf.mxu0
    %v1860 = vadd.f32 0.0, %v1859
    %v1861 = vpop.f32.mrf.mxu0
    %v1862 = vpop.f32.mrf.mxu0
    %v1863 = vadd.f32 0.0, %v1862
    %v1864 = vpop.f32.mrf.mxu0
    %1865 = vmatprep.mubr.bf16.mxu0 0
    %1866 = vmatmul.mubr.bf16.gmra.mxu0 %v1823
    %v1867 = vpop.f32.mrf.mxu0
    %v1868 = vadd.f32 0.0, %v1867
    %v1869 = vpop.f32.mrf.mxu0
    %v1870 = vpop.f32.mrf.mxu0
    %v1871 = vadd.f32 0.0, %v1870
    %v1872 = vpop.f32.mrf.mxu0
    %1873 = vdwg.mxu0
    %v1874 = vpack.c.bf16 %v1863, %v1860
    %v1875 = vpack.c.bf16 %v1871, %v1868
    %s1876 = scalar_lea.vmem %s3, 12
    %v1877 = vld [vmem:[%s1876] sm:$0xf]
    %v1879 = vsel %vm349, %v1874, 0
    %v1882 = vsel %vm349, %v1875, 0
    %v1885 = vsel %vm917, %v1877, 0
    %1887 = vmatprep.subr.bf16.mxu0 0
    %1888 = vmatpush1.bf16.msra.mxu0 0
    %1889 = vmatprep.subr.bf16.mxu0 0
    %1890 = vmatpush1.bf16.msra.mxu0 0
    %1891 = vmatprep.subr.bf16.mxu0 0
    %1892 = vmatpush1.bf16.msra.mxu0 0
    %1893 = vmatprep.subr.bf16.mxu0 0
    %1894 = vmatpush1.bf16.msra.mxu0 0
    %1895 = vmatprep.subr.bf16.mxu0 0
    %1896 = vmatpush1.bf16.msra.mxu0 0
    %1897 = vmatprep.subr.bf16.mxu0 0
    %1898 = vmatpush1.bf16.msra.mxu0 0
    %1899 = vmatprep.subr.bf16.mxu0 0
    %1900 = vmatpush1.bf16.msra.mxu0 0
    %1901 = vmatprep.subr.bf16.mxu0 0
    %1902 = vmatpush1.bf16.msra.mxu0 %v1885
    %1903 = vmatprep.subr.bf16.mxu0 0
    %1904 = vmatpush2.bf16.msra.mxu0 0
    %1905 = vmatprep.subr.bf16.mxu0 0
    %1906 = vmatpush2.bf16.msra.mxu0 0
    %1907 = vmatprep.subr.bf16.mxu0 0
    %1908 = vmatpush2.bf16.msra.mxu0 0
    %1909 = vmatprep.subr.bf16.mxu0 0
    %1910 = vmatpush2.bf16.msra.mxu0 0
    %1911 = vmatprep.subr.bf16.mxu0 0
    %1912 = vmatpush2.bf16.msra.mxu0 0
    %1913 = vmatprep.subr.bf16.mxu0 0
    %1914 = vmatpush2.bf16.msra.mxu0 0
    %1915 = vmatprep.subr.bf16.mxu0 0
    %1916 = vmatpush2.bf16.msra.mxu0 0
    %1917 = vmatprep.subr.bf16.mxu0 0
    %1918 = vmatpush2.bf16.msra.mxu0 0
    %1919 = vmatprep.mubr.bf16.mxu0 0
    %1920 = vmatmul.mubr.bf16.gmra.mxu0 %v1879
    %v1921 = vpop.f32.mrf.mxu0
    %v1922 = vadd.f32 0.0, %v1921
    %v1923 = vpop.f32.mrf.mxu0
    %v1924 = vpop.f32.mrf.mxu0
    %v1925 = vadd.f32 0.0, %v1924
    %v1926 = vpop.f32.mrf.mxu0
    %1927 = vmatprep.mubr.bf16.mxu0 0
    %1928 = vmatmul.mubr.bf16.gmra.mxu0 %v1882
    %v1929 = vpop.f32.mrf.mxu0
    %v1930 = vadd.f32 0.0, %v1929
    %v1931 = vpop.f32.mrf.mxu0
    %v1932 = vpop.f32.mrf.mxu0
    %v1933 = vadd.f32 0.0, %v1932
    %v1934 = vpop.f32.mrf.mxu0
    %1935 = vdwg.mxu0
    %v1936 = vadd.f32 %v1480, %v1922
    %v1937 = vadd.f32 %v1481, %v1925
    %v1938 = vadd.f32 %v1482, %v1930
    %v1939 = vadd.f32 %v1483, %v1933
    %v1940 = vadd.f32 %v31, %v1936
    %v1941 = vadd.f32 %v32, %v1937
    %v1942 = vadd.f32 %v33, %v1938
    %v1943 = vadd.f32 %v34, %v1939
    %v1944 = vld [vmem:[%s4] sm:$0x1]
    %v1945 = vlaneseq
    %v1946 = vshrl.u32 %v1945, 7
    %v1947 = vsub.s32 0, %v1946
    %v1948 = vrot.slane %v1944, %v1947
    %v1949 = vadd.f32 %v1940, %v1948
    %v1950 = vadd.f32 %v1941, %v1948
    %v1951 = vadd.f32 %v1942, %v1948
    %v1952 = vadd.f32 %v1943, %v1948
    %v1953 = vsel %vm55, %v1949, 0.0
    %1954 = vadd.xlane.f32.xlu0 %v1953
    %v1955 = vpop.xlane.xlu0 %1954
    %v1956 = vsel %vm55, %v1950, 0.0
    %1957 = vadd.xlane.f32.xlu0 %v1956
    %v1958 = vpop.xlane.xlu0 %1957
    %v1959 = vsel %vm55, %v1951, 0.0
    %1960 = vadd.xlane.f32.xlu0 %v1959
    %v1961 = vpop.xlane.xlu0 %1960
    %v1962 = vsel %vm55, %v1952, 0.0
    %1963 = vadd.xlane.f32.xlu0 %v1962
    %v1964 = vpop.xlane.xlu0 %1963
    %v1965 = vmul.f32 %v1955, %v68
    %v1966 = vmul.f32 %v1958, %v68
    %v1967 = vmul.f32 %v1961, %v68
    %v1968 = vmul.f32 %v1964, %v68
    %v1969 = vmul.f32 %v1949, %v1949
    %v1970 = vmul.f32 %v1950, %v1950
    %v1971 = vmul.f32 %v1951, %v1951
    %v1972 = vmul.f32 %v1952, %v1952
    %v1973 = vsel %vm55, %v1969, 0.0
    %1974 = vadd.xlane.f32.xlu0 %v1973
    %v1975 = vpop.xlane.xlu0 %1974
    %v1976 = vsel %vm55, %v1970, 0.0
    %1977 = vadd.xlane.f32.xlu0 %v1976
    %v1978 = vpop.xlane.xlu0 %1977
    %v1979 = vsel %vm55, %v1971, 0.0
    %1980 = vadd.xlane.f32.xlu0 %v1979
    %v1981 = vpop.xlane.xlu0 %1980
    %v1982 = vsel %vm55, %v1972, 0.0
    %1983 = vadd.xlane.f32.xlu0 %v1982
    %v1984 = vpop.xlane.xlu0 %1983
    %v1985 = vmul.f32 %v1975, %v68
    %v1986 = vmul.f32 %v1978, %v68
    %v1987 = vmul.f32 %v1981, %v68
    %v1988 = vmul.f32 %v1984, %v68
    %v1989 = vmul.f32 %v1965, %v1965
    %v1990 = vmul.f32 %v1966, %v1966
    %v1991 = vmul.f32 %v1967, %v1967
    %v1992 = vmul.f32 %v1968, %v1968
    %v1993 = vsub.f32 %v1985, %v1989
    %v1994 = vsub.f32 %v1986, %v1990
    %v1995 = vsub.f32 %v1987, %v1991
    %v1996 = vsub.f32 %v1988, %v1992
    %v1997 = vsub.f32 %v1949, %v1965
    %v1998 = vsub.f32 %v1950, %v1966
    %v1999 = vsub.f32 %v1951, %v1967
    %v2000 = vsub.f32 %v1952, %v1968
    %v2001 = vadd.f32 %v1993, 1e-05
    %v2002 = vadd.f32 %v1994, 1e-05
    %v2003 = vadd.f32 %v1995, 1e-05
    %v2004 = vadd.f32 %v1996, 1e-05
    %v2005 = vrsqrt.pop %v2001
    %v2006 = vrsqrt.pop %v2002
    %v2007 = vrsqrt.pop %v2003
    %v2008 = vrsqrt.pop %v2004
    %v2009 = vmul.f32 %v1997, %v2005
    %v2010 = vmul.f32 %v1998, %v2006
    %v2011 = vmul.f32 %v1999, %v2007
    %v2012 = vmul.f32 %v2000, %v2008
    %v2013 = vpack.c.bf16 %v2010, %v2009
    %v2014 = vpack.c.bf16 %v2012, %v2011
    %v2015 = vld [vmem:[%s5] sm:$0xf]
    %v2016 = vld [vmem:[%s5 + $0x4] sm:$0xf]
    %v2017 = vld [vmem:[%s5 + $0x8] sm:$0xf]
    %v2018 = vld [vmem:[%s5 + $0xc] sm:$0xf]
    %v2019 = vld [vmem:[%s6] sm:$0x1]
    %v2021 = vlaneseq
    %v2022 = vshrl.u32 %v2021, 7
    %v2023 = vsub.s32 0, %v2022
    %v2024 = vrot.slane %v2019, %v2023
    %v2030 = vunpack.c.l.b16 %v2015
    %v2031 = vunpack.c.l.b16 %v2016
    %v2032 = vunpack.c.l.b16 %v2017
    %v2033 = vunpack.c.l.b16 %v2018
    %v2034 = vpack.c.b16 %v2031, %v2030
    %v2035 = vpack.c.b16 %v2033, %v2032
    %v2039 = vsel %vm55, %v2013, 0
    %v2042 = vsel %vm55, %v2014, 0
    %2044 = vmatprep.subr.bf16.mxu0 0
    %2045 = vmatpush1.bf16.msra.mxu0 0
    %2046 = vmatprep.subr.bf16.mxu0 0
    %2047 = vmatpush1.bf16.msra.mxu0 0
    %2048 = vmatprep.subr.bf16.mxu0 0
    %2049 = vmatpush1.bf16.msra.mxu0 0
    %2050 = vmatprep.subr.bf16.mxu0 0
    %2051 = vmatpush1.bf16.msra.mxu0 0
    %2052 = vmatprep.subr.bf16.mxu0 0
    %2053 = vmatpush1.bf16.msra.mxu0 0
    %2054 = vmatprep.subr.bf16.mxu0 0
    %2055 = vmatpush1.bf16.msra.mxu0 0
    %2056 = vmatprep.subr.bf16.mxu0 0
    %2057 = vmatpush1.bf16.msra.mxu0 %v2035
    %2058 = vmatprep.subr.bf16.mxu0 0
    %2059 = vmatpush1.bf16.msra.mxu0 %v2034
    %2060 = vmatprep.subr.bf16.mxu0 0
    %2061 = vmatpush2.bf16.msra.mxu0 0
    %2062 = vmatprep.subr.bf16.mxu0 0
    %2063 = vmatpush2.bf16.msra.mxu0 0
    %2064 = vmatprep.subr.bf16.mxu0 0
    %2065 = vmatpush2.bf16.msra.mxu0 0
    %2066 = vmatprep.subr.bf16.mxu0 0
    %2067 = vmatpush2.bf16.msra.mxu0 0
    %2068 = vmatprep.subr.bf16.mxu0 0
    %2069 = vmatpush2.bf16.msra.mxu0 0
    %2070 = vmatprep.subr.bf16.mxu0 0
    %2071 = vmatpush2.bf16.msra.mxu0 0
    %2072 = vmatprep.subr.bf16.mxu0 0
    %2073 = vmatpush2.bf16.msra.mxu0 0
    %2074 = vmatprep.subr.bf16.mxu0 0
    %2075 = vmatpush2.bf16.msra.mxu0 0
    %2076 = vmatprep.mubr.bf16.mxu0 0
    %2077 = vmatmul.mubr.bf16.gmra.mxu0 %v2039
    %v2078 = vpop.f32.mrf.mxu0
    %v2079 = vadd.f32 %v2024, %v2078
    %v2080 = vpop.f32.mrf.mxu0
    %v2081 = vpop.f32.mrf.mxu0
    %v2082 = vadd.f32 %v2024, %v2081
    %v2083 = vpop.f32.mrf.mxu0
    %2084 = vmatprep.mubr.bf16.mxu0 0
    %2085 = vmatmul.mubr.bf16.gmra.mxu0 %v2042
    %v2086 = vpop.f32.mrf.mxu0
    %v2087 = vadd.f32 %v2024, %v2086
    %v2088 = vpop.f32.mrf.mxu0
    %v2089 = vpop.f32.mrf.mxu0
    %v2090 = vadd.f32 %v2024, %v2089
    %v2091 = vpop.f32.mrf.mxu0
    %2092 = vdwg.mxu0
    %v2093 = vmul.f32 %v2079, 0.5
    %v2094 = vmul.f32 %v2082, 0.5
    %v2095 = vmul.f32 %v2087, 0.5
    %v2096 = vmul.f32 %v2090, 0.5
    %v2097 = vmul.f32 %v2079, 0.70710677
    %v2098 = vmul.f32 %v2082, 0.70710677
    %v2099 = vmul.f32 %v2087, 0.70710677
    %v2100 = vmul.f32 %v2090, 0.70710677
    %v2101 = verf.f32.pop %v2097
    %v2102 = verf.f32.pop %v2098
    %v2103 = verf.f32.pop %v2099
    %v2104 = verf.f32.pop %v2100
    %v2105 = vadd.f32 %v2101, 1.0
    %v2106 = vadd.f32 %v2102, 1.0
    %v2107 = vadd.f32 %v2103, 1.0
    %v2108 = vadd.f32 %v2104, 1.0
    %v2109 = vmul.f32 %v2093, %v2105
    %v2110 = vmul.f32 %v2094, %v2106
    %v2111 = vmul.f32 %v2095, %v2107
    %v2112 = vmul.f32 %v2096, %v2108
    %v2113 = vpack.c.bf16 %v2110, %v2109
    %v2114 = vpack.c.bf16 %v2112, %v2111
    %v2115 = vld [vmem:[%s7] sm:$0xf]
    %v2116 = vld [vmem:[%s7 + $0x4] sm:$0xf]
    %v2117 = vld [vmem:[%s7 + $0x8] sm:$0xf]
    %v2118 = vld [vmem:[%s7 + $0xc] sm:$0xf]
    %v2119 = vld [vmem:[%s7 + $0x10] sm:$0xf]
    %v2120 = vld [vmem:[%s7 + $0x14] sm:$0xf]
    %v2121 = vld [vmem:[%s7 + $0x18] sm:$0xf]
    %v2122 = vld [vmem:[%s7 + $0x1c] sm:$0xf]
    %v2123 = vld [vmem:[%s4 + $0x1] sm:$0x1]
    %v2124 = vlaneseq
    %v2125 = vshrl.u32 %v2124, 7
    %v2126 = vsub.s32 0, %v2125
    %v2127 = vrot.slane %v2123, %v2126
    %v2136 = vunpack.c.l.b16 %v2115
    %v2137 = vunpack.c.l.b16 %v2116
    %v2138 = vunpack.c.l.b16 %v2117
    %v2139 = vunpack.c.l.b16 %v2118
    %v2140 = vunpack.c.l.b16 %v2119
    %v2141 = vunpack.c.l.b16 %v2120
    %v2142 = vunpack.c.l.b16 %v2121
    %v2143 = vunpack.c.l.b16 %v2122
    %v2144 = vpack.c.b16 %v2137, %v2136
    %v2145 = vpack.c.b16 %v2139, %v2138
    %v2146 = vpack.c.b16 %v2141, %v2140
    %v2147 = vpack.c.b16 %v2143, %v2142
    %vm2152 = vcmask 523264
    %v2154 = vsel %vm2152, %v2113, 0
    %v2157 = vsel %vm2152, %v2114, 0
    %2159 = vmatprep.subr.bf16.mxu0 0
    %2160 = vmatpush1.bf16.msra.mxu0 0
    %2161 = vmatprep.subr.bf16.mxu0 0
    %2162 = vmatpush1.bf16.msra.mxu0 0
    %2163 = vmatprep.subr.bf16.mxu0 0
    %2164 = vmatpush1.bf16.msra.mxu0 0
    %2165 = vmatprep.subr.bf16.mxu0 0
    %2166 = vmatpush1.bf16.msra.mxu0 0
    %2167 = vmatprep.subr.bf16.mxu0 0
    %2168 = vmatpush1.bf16.msra.mxu0 %v2147
    %2169 = vmatprep.subr.bf16.mxu0 0
    %2170 = vmatpush1.bf16.msra.mxu0 %v2146
    %2171 = vmatprep.subr.bf16.mxu0 0
    %2172 = vmatpush1.bf16.msra.mxu0 %v2145
    %2173 = vmatprep.subr.bf16.mxu0 0
    %2174 = vmatpush1.bf16.msra.mxu0 %v2144
    %2175 = vmatprep.subr.bf16.mxu0 0
    %2176 = vmatpush2.bf16.msra.mxu0 0
    %2177 = vmatprep.subr.bf16.mxu0 0
    %2178 = vmatpush2.bf16.msra.mxu0 0
    %2179 = vmatprep.subr.bf16.mxu0 0
    %2180 = vmatpush2.bf16.msra.mxu0 0
    %2181 = vmatprep.subr.bf16.mxu0 0
    %2182 = vmatpush2.bf16.msra.mxu0 0
    %2183 = vmatprep.subr.bf16.mxu0 0
    %2184 = vmatpush2.bf16.msra.mxu0 0
    %2185 = vmatprep.subr.bf16.mxu0 0
    %2186 = vmatpush2.bf16.msra.mxu0 0
    %2187 = vmatprep.subr.bf16.mxu0 0
    %2188 = vmatpush2.bf16.msra.mxu0 0
    %2189 = vmatprep.subr.bf16.mxu0 0
    %2190 = vmatpush2.bf16.msra.mxu0 0
    %2191 = vmatprep.mubr.bf16.mxu0 0
    %2192 = vmatmul.mubr.bf16.gmra.mxu0 %v2154
    %v2193 = vpop.f32.mrf.mxu0
    %v2194 = vadd.f32 %v2127, %v2193
    %v2195 = vpop.f32.mrf.mxu0
    %v2196 = vpop.f32.mrf.mxu0
    %v2197 = vadd.f32 %v2127, %v2196
    %v2198 = vpop.f32.mrf.mxu0
    %2199 = vmatprep.mubr.bf16.mxu0 0
    %2200 = vmatmul.mubr.bf16.gmra.mxu0 %v2157
    %v2201 = vpop.f32.mrf.mxu0
    %v2202 = vadd.f32 %v2127, %v2201
    %v2203 = vpop.f32.mrf.mxu0
    %v2204 = vpop.f32.mrf.mxu0
    %v2205 = vadd.f32 %v2127, %v2204
    %v2206 = vpop.f32.mrf.mxu0
    %2207 = vdwg.mxu0
    %v2208 = vadd.f32 %v1949, %v2194
    %v2209 = vadd.f32 %v1950, %v2197
    %v2210 = vadd.f32 %v1951, %v2202
    %v2211 = vadd.f32 %v1952, %v2205
    %2212 = vst.msk [vmem:[#allocation2] sm:$0xff] %vm55, %v2208
    %2213 = vst.msk [vmem:[#allocation2 + $0x8] sm:$0xff] %vm55, %v2209
    %2214 = vst.msk [vmem:[#allocation2 + $0x10] sm:$0xff] %vm55, %v2210
    %2215 = vst.msk [vmem:[#allocation2 + $0x18] sm:$0xff] %vm55, %v2211
    // Predicated region
    $region34: #{tpu_custom_call.1} parent=1 // pred_check
      _
    $region35: #{tpu_custom_call.1} parent=1 // pred_check_branch
      %2217 = sbr.rel (0) target = $region37
    $region36: #{tpu_custom_call.1} parent=1 // pred_region
      %s2219 = ssub.s32 512, 512
      %2220 = vsyncadd [#allocation3], %s2219
      %s2221 = sshll.u32 [#allocation2], 4
      %s2222 = int_to_ptr.vmem [resolvable:$true] %s2221
      %2227 = dma.vmem_to_hbm [thread:$0]  %s2222, 512, %s8, [#allocation3], 128, 128, 8
    $region37: #{tpu_custom_call.1} parent=1 // pred_fallthru
      _
    // Predicated region
    $region38: #{tpu_custom_call.1} parent=1 // pred_check
      _
    $region39: #{tpu_custom_call.1} parent=1 // pred_check_branch
      %2229 = sbr.rel (0) target = $region41
    $region40: #{tpu_custom_call.1} parent=1 // pred_region
      %2230 = dma.done [#allocation3], 512
    $region41: #{tpu_custom_call.1} parent=1 // pred_fallthru
      _
    %2231 = vsyncpa [#allocation3], 1

</llo_original>
